<compile_context>
chip_gen: v6e
topology: v6e:2x2x1
jax: 0.10.0
libtpu: 0.0.40
codegen_flags: <defaults>
</compile_context>

<pallas_src>
import functools

import jax
import jax.numpy as jnp
from jax import lax
from jax.experimental import pallas as pl
from jax.experimental.pallas import tpu as pltpu


def _round_up(x, m):
    return (x + m - 1) // m * m


# --------------------------------------------------------------------------- kernel core
def _attention_gru_fc(emb, h, enc, e_proj, mask,
                      wah_ref, v_ref, wih_ref, whh_ref, bih_ref, bhh_ref,
                      wfc_ref, fcb_ref):
    """Per-step body: Bahdanau attention -> context -> GRU cell -> fc_out.

    Activations / element-wise math stay in f32; weights may be bf16 -- MXU operands are
    cast at the dot sites and accumulated in f32.  Weight Refs are sliced directly with
    sublane-aligned static slices (zero-cost views), never loaded whole and re-sliced."""
    f32 = jnp.float32
    wdt = wah_ref.dtype                      # weight compute dtype (bf16 or f32)
    E = emb.shape[-1]
    Hd = h.shape[-1]
    H2 = enc.shape[-1]                       # 2 * enc_hid_dim

    # ---- attention: energy = tanh(h @ W_ah + e_proj); score = energy . v ----
    # e_proj = enc @ W_ae + b_a is step-invariant and precomputed once per source sequence.
    h_proj = jnp.dot(h.astype(wdt), wah_ref[...], preferred_element_type=f32)  # [B, Hd]
    energy = jnp.tanh(h_proj[:, None, :] + e_proj)                             # [B, S, Hd]
    scores = jnp.sum(energy * v_ref[...][None], axis=-1)                       # [B, S]
    scores = jnp.where(mask != 0, scores, -1e10)                               # keep f32!

    # masked softmax over the source length
    m = jnp.max(scores, axis=-1, keepdims=True)
    ex = jnp.exp(scores - m)
    denom = jnp.sum(ex, axis=-1, keepdims=True)
    if wdt == jnp.float32:                   # strict checking config: exact divide
        attn = ex / denom
    else:                                    # perf config: EUP fast reciprocal (free slot)
        attn = ex * pl.reciprocal(denom, approx=True)

    # attention-weighted context (tiny [B,S,2He] VPU/XLU reduce; off the critical path)
    weighted = jnp.sum(attn[:, :, None] * enc, axis=1)                         # [B, 2He]

    # ---- GRU cell (PyTorch gate order r, z, n); packed input-projection weight ----
    gi = (jnp.dot(emb.astype(wdt), wih_ref[:E, :], preferred_element_type=f32)
          + jnp.dot(weighted.astype(wdt), wih_ref[E:, :], preferred_element_type=f32)
          + bih_ref[...])                                                      # [B, 3Hd]
    gh = jnp.dot(h.astype(wdt), whh_ref[...], preferred_element_type=f32) + bhh_ref[...]
    r = jax.nn.sigmoid(gi[:, :Hd] + gh[:, :Hd])
    z = jax.nn.sigmoid(gi[:, Hd:2 * Hd] + gh[:, Hd:2 * Hd])
    n = jnp.tanh(gi[:, 2 * Hd:] + r * gh[:, 2 * Hd:])
    h_new = (1.0 - z) * n + z * h                                              # [B, Hd]

    # ---- fc_out(cat(h_new, weighted, emb)); packed, V-padded (lane-dense) weight ----
    pred = (jnp.dot(h_new.astype(wdt), wfc_ref[:Hd, :], preferred_element_type=f32)
            + jnp.dot(weighted.astype(wdt), wfc_ref[Hd:Hd + H2, :], preferred_element_type=f32)
            + jnp.dot(emb.astype(wdt), wfc_ref[Hd + H2:, :], preferred_element_type=f32)
            + fcb_ref[...])                                                    # [B, V_pad]
    return pred, h_new


def _decoder_step_kernel(emb_ref, h0_ref, enc_ref, eproj_ref, mask_ref,
                         wah_ref, v_ref, wih_ref, whh_ref, bih_ref, bhh_ref,
                         wfc_ref, fcb_ref, pred_ref, hout_ref):
    pred, h_new = _attention_gru_fc(emb_ref[...], h0_ref[...], enc_ref[...], eproj_ref[...],
                                    mask_ref[...], wah_ref, v_ref, wih_ref, whh_ref,
                                    bih_ref, bhh_ref, wfc_ref, fcb_ref)
    pred_ref[...] = pred
    hout_ref[...] = h_new


def _decoder_seq_grid_kernel(emb_ref, h0_ref, enc_ref, eproj_ref, mask_ref,
                             wah_ref, v_ref, wih_ref, whh_ref, bih_ref, bhh_ref,
                             wfc_ref, fcb_ref, pred_ref, hlast_ref):
    """Streaming variant: one grid step == one decode step.  Weight / enc / e_proj / mask
    blocks are constant-indexed -> DMA'd once and resident in VMEM for the whole time grid.
    The recurrence is carried in the constant-indexed `hlast` output block (no scratch)."""
    @pl.when(pl.program_id(0) == 0)
    def _():
        hlast_ref[...] = h0_ref[...]

    pred, h_new = _attention_gru_fc(emb_ref[0], hlast_ref[...], enc_ref[...], eproj_ref[...],
                                    mask_ref[...], wah_ref, v_ref, wih_ref, whh_ref,
                                    bih_ref, bhh_ref, wfc_ref, fcb_ref)
    pred_ref[0] = pred
    hlast_ref[...] = h_new


def _decoder_seq_loop_kernel(T, emb_ref, h0_ref, enc_ref, eproj_ref, mask_ref,
                             wah_ref, v_ref, wih_ref, whh_ref, bih_ref, bhh_ref,
                             wfc_ref, fcb_ref, pred_ref, hlast_ref):
    """Grid-less variant: all T decode steps inside one in-kernel fori_loop (no per-step
    grid overhead, LLO visibility across steps); everything stays VMEM-resident and preds
    rows are written via dynamic leading-dim indexing."""
    enc = enc_ref[...]
    e_proj = eproj_ref[...]
    mask = mask_ref[...]

    def body(t, h):
        pred, h_new = _attention_gru_fc(emb_ref[t], h, enc, e_proj, mask,
                                        wah_ref, v_ref, wih_ref, whh_ref,
                                        bih_ref, bhh_ref, wfc_ref, fcb_ref)
        pred_ref[t] = pred
        return h_new

    hlast_ref[...] = lax.fori_loop(0, T, body, h0_ref[...], unroll=(T <= 8))


# --------------------------------------------------------------------------- host-side glue
def prepare_decoder_params(params, *, emb_dim, dec_hid_dim, weight_dtype=jnp.bfloat16):
    """One-time (per model) weight prep, hoisted out of the decode loop."""
    E, Hd = emb_dim, dec_hid_dim
    V = params["emb"].shape[0]
    V_pad = _round_up(V, 128)
    scale = float(emb_dim) ** 0.5

    # embedding table with the sqrt(emb_dim) scale and the constant pos-0 row folded in
    emb_table = params["emb"] * scale + params["pos_emb"][0][None, :]          # [V, E] f32

    w_attn_t = params["attn_w"].T                                              # [Hd+2He, Hd]
    w_attn_h = w_attn_t[:Hd].astype(weight_dtype)                              # [Hd, Hd]
    w_attn_e = w_attn_t[Hd:].astype(weight_dtype)                              # [2He, Hd]
    attn_b = params["attn_b"]                                                  # [Hd] f32
    attn_v = params["attn_v"][None, :]                                         # [1, Hd] f32
    w_ih = params["gru_w_ih"].T.astype(weight_dtype)                           # [E+2He, 3Hd]
    w_hh = params["gru_w_hh"].T.astype(weight_dtype)                           # [Hd, 3Hd]
    b_ih = params["gru_b_ih"][None, :]                                         # [1, 3Hd] f32
    b_hh = params["gru_b_hh"][None, :]                                         # [1, 3Hd] f32
    w_fc = jnp.pad(params["fc_w"].T, ((0, 0), (0, V_pad - V))).astype(weight_dtype)
    fc_b = jnp.pad(params["fc_b"], (0, V_pad - V))[None, :]                    # [1, V_pad]

    return dict(emb_table=emb_table, w_attn_h=w_attn_h, w_attn_e=w_attn_e,
                attn_b=attn_b, attn_v=attn_v, w_ih=w_ih, w_hh=w_hh, b_ih=b_ih, b_hh=b_hh,
                w_fc=w_fc, fc_b=fc_b, E=E, Hd=Hd, V=V, V_pad=V_pad)


def prepare_encoder_context(prep, encoder_outputs, mask):
    """One-time (per source sequence) prep: seq-major -> batch-major transpose, batch pad to
    full 8-row sublanes, int mask, and the step-invariant attention encoder projection
    e_proj = enc @ W_attn_enc + b_attn (hoisted out of the per-step kernel body)."""
    S, B, H2 = encoder_outputs.shape
    B_pad = _round_up(B, 8)
    enc_bm = jnp.transpose(encoder_outputs, (1, 0, 2))                         # [B, S, 2He]
    enc_bm = jnp.pad(enc_bm, ((0, B_pad - B), (0, 0), (0, 0)))                 # [B_pad, S, 2He]
    wdt = prep["w_attn_e"].dtype
    e_proj = (jnp.einsum("bsh,hd->bsd", enc_bm.astype(wdt), prep["w_attn_e"],
                         preferred_element_type=jnp.float32)
              + prep["attn_b"][None, None, :])                                 # [B_pad, S, Hd]
    mask_i = jnp.pad(mask.astype(jnp.int32), ((0, B_pad - B), (0, 0)))         # [B_pad, S]
    return dict(enc=enc_bm, e_proj=e_proj, mask=mask_i, S=S, B=B, B_pad=B_pad)


def _const_block(x):
    zeros = (0,) * x.ndim
    return pl.BlockSpec(x.shape, lambda t, _z=zeros: _z)


def _cost_estimate(prep, ctx, steps):
    B, S = ctx["B_pad"], ctx["S"]
    E, Hd, V_pad = prep["E"], prep["Hd"], prep["V_pad"]
    H2 = ctx["enc"].shape[-1]
    flops = 2 * B * (Hd * Hd + S * Hd + S * H2
                     + (E + H2) * 3 * Hd + Hd * 3 * Hd + (Hd + H2 + E) * V_pad)
    transc = B * (S * Hd + S + 3 * Hd)
    w_bytes = sum(int(prep[k].size) * prep[k].dtype.itemsize
                  for k in ("w_attn_h", "attn_v", "w_ih", "w_hh", "b_ih", "b_hh",
                            "w_fc", "fc_b"))
    ctx_bytes = (int(ctx["enc"].size) + int(ctx["e_proj"].size) + int(ctx["mask"].size)) * 4
    io_bytes = (B * E + 2 * B * Hd + B * V_pad) * 4
    return pl.CostEstimate(flops=int(steps * flops), transcendentals=int(steps * transc),
                           bytes_accessed=int(w_bytes + ctx_bytes + steps * io_bytes))


def _operands(prep, ctx, emb, hidden_p):
    return (emb, hidden_p, ctx["enc"], ctx["e_proj"], ctx["mask"],
            prep["w_attn_h"], prep["attn_v"], prep["w_ih"], prep["w_hh"],
            prep["b_ih"], prep["b_hh"], prep["w_fc"], prep["fc_b"])


def decoder_step(prep, ctx, inputs, hidden):
    """One Decoder.forward step (eval mode). inputs: [B] int32; hidden: [B, Hd]."""
    B, B_pad = ctx["B"], ctx["B_pad"]
    Hd, V, V_pad = prep["Hd"], prep["V"], prep["V_pad"]

    embedded = jnp.pad(prep["emb_table"][inputs], ((0, B_pad - B), (0, 0)))    # [B_pad, E]
    hidden_p = jnp.pad(hidden, ((0, B_pad - B), (0, 0)))                       # [B_pad, Hd]

    vmem = pltpu.MemorySpace.VMEM
    pred_p, h_p = pl.pallas_call(
        _decoder_step_kernel,
        out_shape=(jax.ShapeDtypeStruct((B_pad, V_pad), jnp.float32),
                   jax.ShapeDtypeStruct((B_pad, Hd), jnp.float32)),
        in_specs=[pl.BlockSpec(memory_space=vmem)] * 13,
        out_specs=(pl.BlockSpec(memory_space=vmem), pl.BlockSpec(memory_space=vmem)),
        cost_estimate=_cost_estimate(prep, ctx, steps=1),
    )(*_operands(prep, ctx, embedded, hidden_p))
    return pred_p[:B, :V], h_p[:B]


def decoder_decode_steps(prep, ctx, tokens, hidden, *, resident_limit_bytes=8 << 20):
    """Teacher-forced multi-step decode fused into ONE pallas_call.

    Small T*V_pad: grid-less in-kernel fori_loop with a VMEM-resident preds slab (no per-step
    grid overhead).  Large T*V_pad (production vocab / v7x's 64 MiB VMEM): streaming
    sequential time grid with resident weights/context and per-step pred writeback."""
    T = int(tokens.shape[0])
    B, B_pad = ctx["B"], ctx["B_pad"]
    E, Hd, V, V_pad = prep["E"], prep["Hd"], prep["V"], prep["V_pad"]

    emb_seq = jnp.pad(prep["emb_table"][tokens], ((0, 0), (0, B_pad - B), (0, 0)))
    hidden_p = jnp.pad(hidden, ((0, B_pad - B), (0, 0)))
    operands = _operands(prep, ctx, emb_seq, hidden_p)

    vmem = pltpu.MemorySpace.VMEM
    out_shape = (jax.ShapeDtypeStruct((T, B_pad, V_pad), jnp.float32),
                 jax.ShapeDtypeStruct((B_pad, Hd), jnp.float32))
    cost = _cost_estimate(prep, ctx, steps=T)

    resident = T * B_pad * (V_pad + E) * 4          # preds + emb slab kept resident in VMEM
    if resident <= resident_limit_bytes:
        preds, h_last = pl.pallas_call(
            functools.partial(_decoder_seq_loop_kernel, T),
            out_shape=out_shape,
            in_specs=[pl.BlockSpec(memory_space=vmem)] * 13,
            out_specs=(pl.BlockSpec(memory_space=vmem), pl.BlockSpec(memory_space=vmem)),
            cost_estimate=cost,
        )(*operands)
    else:
        preds, h_last = pl.pallas_call(
            _decoder_seq_grid_kernel,
            grid=(T,),
            out_shape=out_shape,
            in_specs=[pl.BlockSpec((1, B_pad, E), lambda t: (t, 0, 0))]
                     + [_const_block(x) for x in operands[1:]],
            out_specs=(pl.BlockSpec((1, B_pad, V_pad), lambda t: (t, 0, 0)),
                       pl.BlockSpec((B_pad, Hd), lambda t: (0, 0))),
            compiler_params=pltpu.CompilerParams(dimension_semantics=("arbitrary",)),
            cost_estimate=cost,
        )(*operands)
    return preds[:, :B, :V], h_last[:B]


# --------------------------------------------------------------------------- reference
def _reference(params, inputs, hidden, encoder_outputs, mask, *, emb_dim, dec_hid_dim):
    """Pure-JAX f32 reference mirroring the PyTorch forward (eval mode)."""
    Hd = dec_hid_dim
    tok_emb = params["emb"][inputs] * (float(emb_dim) ** 0.5) + params["pos_emb"][0]
    enc = jnp.transpose(encoder_outputs, (1, 0, 2))
    h_rep = jnp.broadcast_to(hidden[:, None, :], (enc.shape[0], enc.shape[1], Hd))
    energy = jnp.tanh(jnp.concatenate([h_rep, enc], -1) @ params["attn_w"].T + params["attn_b"])
    scores = jnp.where(mask > 0.5, energy @ params["attn_v"], -1e10)
    attn = jax.nn.softmax(scores, axis=-1)
    weighted = jnp.einsum("bs,bsh->bh", attn, enc)
    x = jnp.concatenate([tok_emb, weighted], -1)
    gi = x @ params["gru_w_ih"].T + params["gru_b_ih"]
    gh = hidden @ params["gru_w_hh"].T + params["gru_b_hh"]
    r = jax.nn.sigmoid(gi[:, :Hd] + gh[:, :Hd])
    z = jax.nn.sigmoid(gi[:, Hd:2 * Hd] + gh[:, Hd:2 * Hd])
    n = jnp.tanh(gi[:, 2 * Hd:] + r * gh[:, 2 * Hd:])
    h_new = (1 - z) * n + z * hidden
    pred = jnp.concatenate([h_new, weighted, tok_emb], -1) @ params["fc_w"].T + params["fc_b"]
    return pred, h_new


if __name__ == "__main__":
    # small shapes consistent with the module
    V, E, He, Hd = 64, 16, 16, 32      # output_dim, emb_dim, enc_hid_dim, dec_hid_dim
    S, B, MAXLEN, T = 8, 4, 100, 5

    key = jax.random.PRNGKey(0)
    ks = jax.random.split(key, 16)
    f32 = jnp.float32
    params = {
        "emb":      jax.random.normal(ks[0], (V, E), f32) * 0.1,
        "pos_emb":  jax.random.normal(ks[1], (MAXLEN, E), f32) * 0.1,
        "attn_w":   jax.random.normal(ks[2], (Hd, Hd + 2 * He), f32) * 0.1,
        "attn_b":   jax.random.normal(ks[3], (Hd,), f32) * 0.1,
        "attn_v":   jax.random.normal(ks[4], (Hd,), f32) * 0.1,
        "gru_w_ih": jax.random.normal(ks[5], (3 * Hd, E + 2 * He), f32) * 0.1,
        "gru_w_hh": jax.random.normal(ks[6], (3 * Hd, Hd), f32) * 0.1,
        "gru_b_ih": jax.random.normal(ks[7], (3 * Hd,), f32) * 0.1,
        "gru_b_hh": jax.random.normal(ks[8], (3 * Hd,), f32) * 0.1,
        "fc_w":     jax.random.normal(ks[9], (V, 2 * He + Hd + E), f32) * 0.1,
        "fc_b":     jax.random.normal(ks[10], (V,), f32) * 0.1,
    }

    inputs = jax.random.randint(ks[11], (B,), 0, V, jnp.int32)          # target tokens
    hidden = jax.random.normal(ks[12], (B, Hd), f32)                    # decoder hidden
    encoder_outputs = jax.random.normal(ks[13], (S, B, 2 * He), f32)    # seq-major (PyTorch)
    mask = jnp.ones((B, S), f32).at[1, -2:].set(0.0)                    # pad last 2 of item 1

    # TODO(synk): nn.Dropout is stochastic in training mode; implemented here as eval-mode identity.
    pred_ref, h_ref = _reference(params, inputs, hidden, encoder_outputs, mask,
                                 emb_dim=E, dec_hid_dim=Hd)

    # --- exact f32 weights: tight check of the kernel structure ---
    prep32 = prepare_decoder_params(params, emb_dim=E, dec_hid_dim=Hd, weight_dtype=jnp.float32)
    ctx32 = prepare_encoder_context(prep32, encoder_outputs, mask)      # once per source seq
    pred, h_new = decoder_step(prep32, ctx32, inputs, hidden)
    jax.block_until_ready((pred, h_new))
    assert pred.shape == (B, V) and h_new.shape == (B, Hd)
    assert jnp.allclose(pred, pred_ref, atol=2e-4, rtol=2e-4)
    assert jnp.allclose(h_new, h_ref, atol=2e-4, rtol=2e-4)

    # --- bf16 weights (perf mode): looser tolerance vs. the f32 reference ---
    prep16 = prepare_decoder_params(params, emb_dim=E, dec_hid_dim=Hd, weight_dtype=jnp.bfloat16)
    ctx16 = prepare_encoder_context(prep16, encoder_outputs, mask)
    pred16, h16 = decoder_step(prep16, ctx16, inputs, hidden)
    jax.block_until_ready((pred16, h16))
    assert jnp.allclose(pred16, pred_ref, atol=3e-2, rtol=3e-2)
    assert jnp.allclose(h16, h_ref, atol=3e-2, rtol=3e-2)

    # --- fused multi-step decode: in-kernel loop variant (default at these sizes) ---
    tokens = jax.random.randint(ks[14], (T, B), 0, V, jnp.int32)
    preds_seq, h_seq = decoder_decode_steps(prep32, ctx32, tokens, hidden)
    jax.block_until_ready((preds_seq, h_seq))
    h_r = hidden
    for t in range(T):
        p_r, h_r = _reference(params, tokens[t], h_r, encoder_outputs, mask,
                              emb_dim=E, dec_hid_dim=Hd)
        assert jnp.allclose(preds_seq[t], p_r, atol=5e-4, rtol=5e-4)
    assert jnp.allclose(h_seq, h_r, atol=5e-4, rtol=5e-4)

    # --- streaming time-grid variant (used when T*V_pad would not stay VMEM-resident) ---
    preds_g, h_g = decoder_decode_steps(prep32, ctx32, tokens, hidden, resident_limit_bytes=0)
    jax.block_until_ready((preds_g, h_g))
    assert jnp.allclose(preds_g, preds_seq, atol=1e-5, rtol=1e-5)
    assert jnp.allclose(h_g, h_seq, atol=1e-5, rtol=1e-5)

    print("KERNEL_OK")
</pallas_src>

<mosaic_0001>
module attributes {stable_mosaic.version = 11 : i64} {
  func.func @_decoder_step_kernel(%arg0: memref<8x16xf32, #tpu.memory_space<vmem>>, %arg1: memref<8x32xf32, #tpu.memory_space<vmem>>, %arg2: memref<8x8x32xf32, #tpu.memory_space<vmem>>, %arg3: memref<8x8x32xf32, #tpu.memory_space<vmem>>, %arg4: memref<8x8xi32, #tpu.memory_space<vmem>>, %arg5: memref<32x32xf32, #tpu.memory_space<vmem>>, %arg6: memref<1x32xf32, #tpu.memory_space<vmem>>, %arg7: memref<48x96xf32, #tpu.memory_space<vmem>>, %arg8: memref<32x96xf32, #tpu.memory_space<vmem>>, %arg9: memref<1x96xf32, #tpu.memory_space<vmem>>, %arg10: memref<1x96xf32, #tpu.memory_space<vmem>>, %arg11: memref<80x128xf32, #tpu.memory_space<vmem>>, %arg12: memref<1x128xf32, #tpu.memory_space<vmem>>, %arg13: memref<8x128xf32, #tpu.memory_space<vmem>>, %arg14: memref<8x32xf32, #tpu.memory_space<vmem>>) attributes {dimension_semantics = [], scalar_prefetch = 0 : i64, scratch_operands = 0 : i64, tpu.core_type = #tpu.core_type<tc>} {
    %c0 = arith.constant 0 : index
    %c0_0 = arith.constant 0 : index
    %0 = vector.load %arg0[%c0, %c0_0] : memref<8x16xf32, #tpu.memory_space<vmem>>, vector<8x16xf32>
    %c0_1 = arith.constant 0 : index
    %c0_2 = arith.constant 0 : index
    %1 = vector.load %arg1[%c0_1, %c0_2] : memref<8x32xf32, #tpu.memory_space<vmem>>, vector<8x32xf32>
    %c0_3 = arith.constant 0 : index
    %c0_4 = arith.constant 0 : index
    %c0_5 = arith.constant 0 : index
    %2 = vector.load %arg2[%c0_3, %c0_4, %c0_5] : memref<8x8x32xf32, #tpu.memory_space<vmem>>, vector<8x8x32xf32>
    %c0_6 = arith.constant 0 : index
    %c0_7 = arith.constant 0 : index
    %c0_8 = arith.constant 0 : index
    %3 = vector.load %arg3[%c0_6, %c0_7, %c0_8] : memref<8x8x32xf32, #tpu.memory_space<vmem>>, vector<8x8x32xf32>
    %c0_9 = arith.constant 0 : index
    %c0_10 = arith.constant 0 : index
    %4 = vector.load %arg4[%c0_9, %c0_10] : memref<8x8xi32, #tpu.memory_space<vmem>>, vector<8x8xi32>
    %c0_11 = arith.constant 0 : index
    %c0_12 = arith.constant 0 : index
    %5 = vector.load %arg5[%c0_11, %c0_12] : memref<32x32xf32, #tpu.memory_space<vmem>>, vector<32x32xf32>
    %cst = arith.constant dense<0.000000e+00> : vector<8x32xf32>
    %6 = tpu.matmul %1, %5, %cst {dimension_numbers = #tpu.dot_dimension_numbers<[1], [0], [0], [1], [0, 0, 1, 1], [], []>} : vector<8x32xf32>, vector<32x32xf32>, vector<8x32xf32> -> vector<8x32xf32>
    %7 = vector.shape_cast %6 : vector<8x32xf32> to vector<8x1x32xf32>
    %8 = vector.broadcast %7 : vector<8x1x32xf32> to vector<8x8x32xf32>
    %9 = arith.addf %8, %3 : vector<8x8x32xf32>
    %10 = math.tanh %9 : vector<8x8x32xf32>
    %c0_13 = arith.constant 0 : index
    %c0_14 = arith.constant 0 : index
    %11 = vector.load %arg6[%c0_13, %c0_14] : memref<1x32xf32, #tpu.memory_space<vmem>>, vector<1x32xf32>
    %12 = vector.shape_cast %11 : vector<1x32xf32> to vector<1x1x32xf32>
    %13 = vector.broadcast %12 : vector<1x1x32xf32> to vector<8x8x32xf32>
    %14 = arith.mulf %10, %13 : vector<8x8x32xf32>
    %cst_15 = arith.constant dense<0.000000e+00> : vector<8x8xf32>
    %15 = vector.multi_reduction <add>, %14, %cst_15 [2] : vector<8x8x32xf32> to vector<8x8xf32>
    %c0_i32 = arith.constant 0 : i32
    %16 = vector.broadcast %c0_i32 : i32 to vector<8x8xi32>
    %17 = arith.cmpi ne, %4, %16 : vector<8x8xi32>
    %cst_16 = arith.constant -1.000000e+10 : f32
    %18 = vector.broadcast %cst_16 : f32 to vector<8x8xf32>
    %19 = arith.select %17, %15, %18 : vector<8x8xi1>, vector<8x8xf32>
    %cst_17 = arith.constant dense<0xFF800000> : vector<8xf32>
    %20 = vector.multi_reduction <maximumf>, %19, %cst_17 [1] : vector<8x8xf32> to vector<8xf32>
    %21 = vector.shape_cast %20 : vector<8xf32> to vector<8x1xf32>
    %22 = vector.broadcast %21 : vector<8x1xf32> to vector<8x8xf32>
    %23 = arith.subf %19, %22 : vector<8x8xf32>
    %24 = math.exp %23 : vector<8x8xf32>
    %cst_18 = arith.constant dense<0.000000e+00> : vector<8xf32>
    %25 = vector.multi_reduction <add>, %24, %cst_18 [1] : vector<8x8xf32> to vector<8xf32>
    %26 = vector.shape_cast %25 : vector<8xf32> to vector<8x1xf32>
    %27 = vector.broadcast %26 : vector<8x1xf32> to vector<8x8xf32>
    %28 = arith.divf %24, %27 : vector<8x8xf32>
    %29 = vector.shape_cast %28 : vector<8x8xf32> to vector<8x8x1xf32>
    %30 = vector.broadcast %29 : vector<8x8x1xf32> to vector<8x8x32xf32>
    %31 = arith.mulf %30, %2 : vector<8x8x32xf32>
    %cst_19 = arith.constant dense<0.000000e+00> : vector<8x32xf32>
    %32 = vector.multi_reduction <add>, %31, %cst_19 [1] : vector<8x8x32xf32> to vector<8x32xf32>
    %c0_20 = arith.constant 0 : index
    %c0_21 = arith.constant 0 : index
    %33 = vector.load %arg7[%c0_20, %c0_21] : memref<48x96xf32, #tpu.memory_space<vmem>>, vector<16x96xf32>
    %cst_22 = arith.constant dense<0.000000e+00> : vector<8x96xf32>
    %34 = tpu.matmul %0, %33, %cst_22 {dimension_numbers = #tpu.dot_dimension_numbers<[1], [0], [0], [1], [0, 0, 1, 1], [], []>} : vector<8x16xf32>, vector<16x96xf32>, vector<8x96xf32> -> vector<8x96xf32>
    %c16 = arith.constant 16 : index
    %c0_23 = arith.constant 0 : index
    %35 = vector.load %arg7[%c16, %c0_23] : memref<48x96xf32, #tpu.memory_space<vmem>>, vector<32x96xf32>
    %cst_24 = arith.constant dense<0.000000e+00> : vector<8x96xf32>
    %36 = tpu.matmul %32, %35, %cst_24 {dimension_numbers = #tpu.dot_dimension_numbers<[1], [0], [0], [1], [0, 0, 1, 1], [], []>} : vector<8x32xf32>, vector<32x96xf32>, vector<8x96xf32> -> vector<8x96xf32>
    %37 = arith.addf %34, %36 : vector<8x96xf32>
    %c0_25 = arith.constant 0 : index
    %c0_26 = arith.constant 0 : index
    %38 = vector.load %arg9[%c0_25, %c0_26] : memref<1x96xf32, #tpu.memory_space<vmem>>, vector<1x96xf32>
    %39 = vector.broadcast %38 : vector<1x96xf32> to vector<8x96xf32>
    %40 = arith.addf %37, %39 : vector<8x96xf32>
    %c0_27 = arith.constant 0 : index
    %c0_28 = arith.constant 0 : index
    %41 = vector.load %arg8[%c0_27, %c0_28] : memref<32x96xf32, #tpu.memory_space<vmem>>, vector<32x96xf32>
    %cst_29 = arith.constant dense<0.000000e+00> : vector<8x96xf32>
    %42 = tpu.matmul %1, %41, %cst_29 {dimension_numbers = #tpu.dot_dimension_numbers<[1], [0], [0], [1], [0, 0, 1, 1], [], []>} : vector<8x32xf32>, vector<32x96xf32>, vector<8x96xf32> -> vector<8x96xf32>
    %c0_30 = arith.constant 0 : index
    %c0_31 = arith.constant 0 : index
    %43 = vector.load %arg10[%c0_30, %c0_31] : memref<1x96xf32, #tpu.memory_space<vmem>>, vector<1x96xf32>
    %44 = vector.broadcast %43 : vector<1x96xf32> to vector<8x96xf32>
    %45 = arith.addf %42, %44 : vector<8x96xf32>
    %46 = vector.extract_strided_slice %40 {offsets = [0, 0], sizes = [8, 32], strides = [1, 1]} : vector<8x96xf32> to vector<8x32xf32>
    %47 = vector.extract_strided_slice %45 {offsets = [0, 0], sizes = [8, 32], strides = [1, 1]} : vector<8x96xf32> to vector<8x32xf32>
    %48 = arith.addf %46, %47 : vector<8x32xf32>
    %49 = arith.negf %48 : vector<8x32xf32>
    %50 = math.exp %49 : vector<8x32xf32>
    %cst_32 = arith.constant 1.000000e+00 : f32
    %51 = vector.broadcast %cst_32 : f32 to vector<8x32xf32>
    %52 = arith.addf %51, %50 : vector<8x32xf32>
    %53 = arith.divf %51, %52 : vector<8x32xf32>
    %54 = vector.extract_strided_slice %40 {offsets = [0, 32], sizes = [8, 32], strides = [1, 1]} : vector<8x96xf32> to vector<8x32xf32>
    %55 = vector.extract_strided_slice %45 {offsets = [0, 32], sizes = [8, 32], strides = [1, 1]} : vector<8x96xf32> to vector<8x32xf32>
    %56 = arith.addf %54, %55 : vector<8x32xf32>
    %57 = arith.negf %56 : vector<8x32xf32>
    %58 = math.exp %57 : vector<8x32xf32>
    %cst_33 = arith.constant 1.000000e+00 : f32
    %59 = vector.broadcast %cst_33 : f32 to vector<8x32xf32>
    %60 = arith.addf %59, %58 : vector<8x32xf32>
    %61 = arith.divf %59, %60 : vector<8x32xf32>
    %62 = vector.extract_strided_slice %40 {offsets = [0, 64], sizes = [8, 32], strides = [1, 1]} : vector<8x96xf32> to vector<8x32xf32>
    %63 = vector.extract_strided_slice %45 {offsets = [0, 64], sizes = [8, 32], strides = [1, 1]} : vector<8x96xf32> to vector<8x32xf32>
    %64 = arith.mulf %53, %63 : vector<8x32xf32>
    %65 = arith.addf %62, %64 : vector<8x32xf32>
    %66 = math.tanh %65 : vector<8x32xf32>
    %cst_34 = arith.constant 1.000000e+00 : f32
    %67 = vector.broadcast %cst_34 : f32 to vector<8x32xf32>
    %68 = arith.subf %67, %61 : vector<8x32xf32>
    %69 = arith.mulf %68, %66 : vector<8x32xf32>
    %70 = arith.mulf %61, %1 : vector<8x32xf32>
    %71 = arith.addf %69, %70 : vector<8x32xf32>
    %c0_35 = arith.constant 0 : index
    %c0_36 = arith.constant 0 : index
    %72 = vector.load %arg11[%c0_35, %c0_36] : memref<80x128xf32, #tpu.memory_space<vmem>>, vector<32x128xf32>
    %cst_37 = arith.constant dense<0.000000e+00> : vector<8x128xf32>
    %73 = tpu.matmul %71, %72, %cst_37 {dimension_numbers = #tpu.dot_dimension_numbers<[1], [0], [0], [1], [0, 0, 1, 1], [], []>} : vector<8x32xf32>, vector<32x128xf32>, vector<8x128xf32> -> vector<8x128xf32>
    %c32 = arith.constant 32 : index
    %c0_38 = arith.constant 0 : index
    %74 = vector.load %arg11[%c32, %c0_38] : memref<80x128xf32, #tpu.memory_space<vmem>>, vector<32x128xf32>
    %cst_39 = arith.constant dense<0.000000e+00> : vector<8x128xf32>
    %75 = tpu.matmul %32, %74, %cst_39 {dimension_numbers = #tpu.dot_dimension_numbers<[1], [0], [0], [1], [0, 0, 1, 1], [], []>} : vector<8x32xf32>, vector<32x128xf32>, vector<8x128xf32> -> vector<8x128xf32>
    %76 = arith.addf %73, %75 : vector<8x128xf32>
    %c64 = arith.constant 64 : index
    %c0_40 = arith.constant 0 : index
    %77 = vector.load %arg11[%c64, %c0_40] : memref<80x128xf32, #tpu.memory_space<vmem>>, vector<16x128xf32>
    %cst_41 = arith.constant dense<0.000000e+00> : vector<8x128xf32>
    %78 = tpu.matmul %0, %77, %cst_41 {dimension_numbers = #tpu.dot_dimension_numbers<[1], [0], [0], [1], [0, 0, 1, 1], [], []>} : vector<8x16xf32>, vector<16x128xf32>, vector<8x128xf32> -> vector<8x128xf32>
    %79 = arith.addf %76, %78 : vector<8x128xf32>
    %c0_42 = arith.constant 0 : index
    %c0_43 = arith.constant 0 : index
    %80 = vector.load %arg12[%c0_42, %c0_43] : memref<1x128xf32, #tpu.memory_space<vmem>>, vector<1x128xf32>
    %81 = vector.broadcast %80 : vector<1x128xf32> to vector<8x128xf32>
    %82 = arith.addf %79, %81 : vector<8x128xf32>
    %c0_44 = arith.constant 0 : index
    %c0_45 = arith.constant 0 : index
    %83 = vector.load %arg13[%c0_44, %c0_45] : memref<8x128xf32, #tpu.memory_space<vmem>>, vector<8x128xf32>
    tpu.vector_store %arg13[%c0_44, %c0_45], %82 {strides = array<i32>} : memref<8x128xf32, #tpu.memory_space<vmem>>, vector<8x128xf32>,
    %c0_46 = arith.constant 0 : index
    %c0_47 = arith.constant 0 : index
    %84 = vector.load %arg14[%c0_46, %c0_47] : memref<8x32xf32, #tpu.memory_space<vmem>>, vector<8x32xf32>
    tpu.vector_store %arg14[%c0_46, %c0_47], %71 {strides = array<i32>} : memref<8x32xf32, #tpu.memory_space<vmem>>, vector<8x32xf32>,
    return
  }
}

</mosaic_0001>

<llo_original>
// kernel: tpu_custom_call.1
$region0: #{tpu_custom_call.1}
  #allocation0 [shape = 'u32[]', space=smem, size = 0x4, offset = 0x4, fixed_abs, tag = 'smem constant byte address 0x4 - core index']
  #allocation1 [shape = 'u32[144,128]{1,0:T(1,128)}', space=vmem, size = 0x12000, scoped, tag = 'internal scratch']
  %s0 = inlined_call_operand.hbm [shape: f32[8,16], index: 0, kind: input, shape index: {}]
  %s1 = inlined_call_operand.hbm [shape: f32[8,32], index: 1, kind: input, shape index: {}]
  %s2 = inlined_call_operand.hbm [shape: f32[8,8,32], index: 2, kind: input, shape index: {}]
  %s3 = inlined_call_operand.hbm [shape: f32[8,8,32], index: 3, kind: input, shape index: {}]
  %s4 = inlined_call_operand.hbm [shape: s32[8,8], index: 4, kind: input, shape index: {}]
  %s5 = inlined_call_operand.hbm [shape: f32[32,32], index: 5, kind: input, shape index: {}]
  %s6 = inlined_call_operand.vmem [shape: f32[1,32], index: 6, kind: input, shape index: {}]
  %s7 = inlined_call_operand.hbm [shape: f32[48,96], index: 7, kind: input, shape index: {}]
  %s8 = inlined_call_operand.hbm [shape: f32[32,96], index: 8, kind: input, shape index: {}]
  %s9 = inlined_call_operand.vmem [shape: f32[1,96], index: 9, kind: input, shape index: {}]
  %s10 = inlined_call_operand.vmem [shape: f32[1,96], index: 10, kind: input, shape index: {}]
  %s11 = inlined_call_operand.hbm [shape: f32[80,128], index: 11, kind: input, shape index: {}]
  %s12 = inlined_call_operand.vmem [shape: f32[1,128], index: 12, kind: input, shape index: {}]
  %s13 = inlined_call_operand.hbm [shape: f32[8,128], index: 13, kind: output, shape index: {0}]
  %s14 = inlined_call_operand.hbm [shape: f32[8,32], index: 14, kind: output, shape index: {1}]
  %15 = xla_tuple %s13, %s14
  %s16 = sld [smem:[#allocation0]]
  $region106: #{tpu_custom_call.1} parent=0
    _
  %s18 = ssub.s32 1, %s16
  %s19 = scalar_select 0, %s18, %s16
  $region1: #{tpu_custom_call.1} parent=0
    #allocation2 [shape = 'u8[4096]{0}', space=vmem, size = 0x1000, scoped, tag = 'input window, operand 0, single buffered']
    #allocation3 [shape = 's32[1]{0}', space=sflag, size = 0x4, scoped, tag = 'scoped memory for tpu_custom_call.1']
    #allocation4 [shape = 's32[1]{0}', space=sflag, size = 0x4, scoped, tag = 'scoped memory for tpu_custom_call.1']
    #allocation5 [shape = 'u8[4096]{0}', space=vmem, size = 0x1000, scoped, tag = 'input window, operand 1, single buffered']
    #allocation6 [shape = 's32[1]{0}', space=sflag, size = 0x4, scoped, tag = 'scoped memory for tpu_custom_call.1']
    #allocation7 [shape = 'u8[32768]{0}', space=vmem, size = 0x8000, scoped, tag = 'input window, operand 2, single buffered']
    #allocation8 [shape = 'u8[32768]{0}', space=vmem, size = 0x8000, scoped, tag = 'input window, operand 3, single buffered']
    #allocation9 [shape = 's32[1]{0}', space=sflag, size = 0x4, scoped, tag = 'scoped memory for tpu_custom_call.1']
    #allocation10 [shape = 'u8[4096]{0}', space=vmem, size = 0x1000, scoped, tag = 'input window, operand 4, single buffered']
    #allocation11 [shape = 'u8[16384]{0}', space=vmem, size = 0x4000, scoped, tag = 'input window, operand 5, single buffered']
    #allocation12 [shape = 's32[1]{0}', space=sflag, size = 0x4, scoped, tag = 'scoped memory for tpu_custom_call.1']
    #allocation13 [shape = 'u8[24576]{0}', space=vmem, size = 0x6000, scoped, tag = 'input window, operand 7, single buffered']
    #allocation14 [shape = 'u8[16384]{0}', space=vmem, size = 0x4000, scoped, tag = 'input window, operand 8, single buffered']
    #allocation15 [shape = 's32[1]{0}', space=sflag, size = 0x4, scoped, tag = 'scoped memory for tpu_custom_call.1']
    #allocation16 [shape = 'u8[40960]{0}', space=vmem, size = 0xa000, scoped, tag = 'input window, operand 11, single buffered']
    #allocation17 [shape = 'u8[4096]{0}', space=vmem, size = 0x1000, scoped, tag = 'output window, operand 0, single buffered']
    #allocation18 [shape = 'u8[4096]{0}', space=vmem, size = 0x1000, scoped, tag = 'output window, operand 1, single buffered']
    #allocation19 [shape = 's32[1]{0}', space=sflag, size = 0x4, scoped, tag = 'scoped memory for tpu_custom_call.1']
    %20 = vsyncpa [#allocation3], 0
    %21 = vsyncpa [#allocation6], 0
    %22 = vsyncpa [#allocation9], 0
    %23 = vsyncpa [#allocation12], 0
    %24 = vsyncpa [#allocation15], 0
    %25 = vsyncpa [#allocation4], 0
    %26 = vsyncpa [#allocation19], 0
    // Predicated region
    $region2: #{tpu_custom_call.1} parent=1 // pred_check
      _
    $region3: #{tpu_custom_call.1} parent=1 // pred_check_branch
      %28 = sbr.rel (0) target = $region5
    $region4: #{tpu_custom_call.1} parent=1 // pred_region
      %s30 = ssub.s32 128, 128
      %31 = vsyncadd [#allocation3], %s30
      %s33 = sshll.u32 [#allocation2], 4
      %s34 = int_to_ptr.vmem [resolvable:$true] %s33
      %36 = dma.hbm_to_vmem [thread:$0]  %s0, 128, %s34, [#allocation3]
    $region5: #{tpu_custom_call.1} parent=1 // pred_fallthru
      _
    // Predicated region
    $region6: #{tpu_custom_call.1} parent=1 // pred_check
      _
    $region7: #{tpu_custom_call.1} parent=1 // pred_check_branch
      %38 = sbr.rel (0) target = $region9
    $region8: #{tpu_custom_call.1} parent=1 // pred_region
      %s40 = ssub.s32 128, 128
      %41 = vsyncadd [#allocation6], %s40
      %s43 = sshll.u32 [#allocation5], 4
      %s44 = int_to_ptr.vmem [resolvable:$true] %s43
      %46 = dma.hbm_to_vmem [thread:$0]  %s1, 128, %s44, [#allocation6]
    $region9: #{tpu_custom_call.1} parent=1 // pred_fallthru
      _
    // Predicated region
    $region10: #{tpu_custom_call.1} parent=1 // pred_check
      _
    $region11: #{tpu_custom_call.1} parent=1 // pred_check_branch
      %48 = sbr.rel (0) target = $region13
    $region12: #{tpu_custom_call.1} parent=1 // pred_region
      %s50 = ssub.s32 1024, 1024
      %51 = vsyncadd [#allocation6], %s50
      %s52 = sshll.u32 [#allocation7], 4
      %s53 = int_to_ptr.vmem [resolvable:$true] %s52
      %58 = dma.hbm_to_vmem [thread:$0]  %s2, 1024, %s53, [#allocation6], 128, 128, 8
    $region13: #{tpu_custom_call.1} parent=1 // pred_fallthru
      _
    // Predicated region
    $region14: #{tpu_custom_call.1} parent=1 // pred_check
      _
    $region15: #{tpu_custom_call.1} parent=1 // pred_check_branch
      %60 = sbr.rel (0) target = $region17
    $region16: #{tpu_custom_call.1} parent=1 // pred_region
      %s62 = ssub.s32 1024, 1024
      %63 = vsyncadd [#allocation9], %s62
      %s64 = sshll.u32 [#allocation8], 4
      %s65 = int_to_ptr.vmem [resolvable:$true] %s64
      %70 = dma.hbm_to_vmem [thread:$0]  %s3, 1024, %s65, [#allocation9], 128, 128, 8
    $region17: #{tpu_custom_call.1} parent=1 // pred_fallthru
      _
    // Predicated region
    $region18: #{tpu_custom_call.1} parent=1 // pred_check
      _
    $region19: #{tpu_custom_call.1} parent=1 // pred_check_branch
      %72 = sbr.rel (0) target = $region21
    $region20: #{tpu_custom_call.1} parent=1 // pred_region
      %s74 = ssub.s32 128, 128
      %75 = vsyncadd [#allocation9], %s74
      %s77 = sshll.u32 [#allocation10], 4
      %s78 = int_to_ptr.vmem [resolvable:$true] %s77
      %80 = dma.hbm_to_vmem [thread:$0]  %s4, 128, %s78, [#allocation9]
    $region21: #{tpu_custom_call.1} parent=1 // pred_fallthru
      _
    // Predicated region
    $region22: #{tpu_custom_call.1} parent=1 // pred_check
      _
    $region23: #{tpu_custom_call.1} parent=1 // pred_check_branch
      %82 = sbr.rel (0) target = $region25
    $region24: #{tpu_custom_call.1} parent=1 // pred_region
      %s84 = ssub.s32 512, 512
      %85 = vsyncadd [#allocation12], %s84
      %s86 = sshll.u32 [#allocation11], 4
      %s87 = int_to_ptr.vmem [resolvable:$true] %s86
      %92 = dma.hbm_to_vmem [thread:$0]  %s5, 512, %s87, [#allocation12], 128, 128, 8
    $region25: #{tpu_custom_call.1} parent=1 // pred_fallthru
      _
    // Predicated region
    $region26: #{tpu_custom_call.1} parent=1 // pred_check
      _
    $region27: #{tpu_custom_call.1} parent=1 // pred_check_branch
      %94 = sbr.rel (0) target = $region29
    $region28: #{tpu_custom_call.1} parent=1 // pred_region
      _
    $region29: #{tpu_custom_call.1} parent=1 // pred_fallthru
      _
    // Predicated region
    $region30: #{tpu_custom_call.1} parent=1 // pred_check
      _
    $region31: #{tpu_custom_call.1} parent=1 // pred_check_branch
      %96 = sbr.rel (0) target = $region33
    $region32: #{tpu_custom_call.1} parent=1 // pred_region
      %s98 = ssub.s32 768, 768
      %99 = vsyncadd [#allocation12], %s98
      %s100 = sshll.u32 [#allocation13], 4
      %s101 = int_to_ptr.vmem [resolvable:$true] %s100
      %106 = dma.hbm_to_vmem [thread:$0]  %s7, 768, %s101, [#allocation12], 128, 128, 8
    $region33: #{tpu_custom_call.1} parent=1 // pred_fallthru
      _
    // Predicated region
    $region34: #{tpu_custom_call.1} parent=1 // pred_check
      _
    $region35: #{tpu_custom_call.1} parent=1 // pred_check_branch
      %108 = sbr.rel (0) target = $region37
    $region36: #{tpu_custom_call.1} parent=1 // pred_region
      %s110 = ssub.s32 512, 512
      %111 = vsyncadd [#allocation15], %s110
      %s112 = sshll.u32 [#allocation14], 4
      %s113 = int_to_ptr.vmem [resolvable:$true] %s112
      %118 = dma.hbm_to_vmem [thread:$0]  %s8, 512, %s113, [#allocation15], 128, 128, 8
    $region37: #{tpu_custom_call.1} parent=1 // pred_fallthru
      _
    // Predicated region
    $region38: #{tpu_custom_call.1} parent=1 // pred_check
      _
    $region39: #{tpu_custom_call.1} parent=1 // pred_check_branch
      %120 = sbr.rel (0) target = $region41
    $region40: #{tpu_custom_call.1} parent=1 // pred_region
      _
    $region41: #{tpu_custom_call.1} parent=1 // pred_fallthru
      _
    // Predicated region
    $region42: #{tpu_custom_call.1} parent=1 // pred_check
      _
    $region43: #{tpu_custom_call.1} parent=1 // pred_check_branch
      %122 = sbr.rel (0) target = $region45
    $region44: #{tpu_custom_call.1} parent=1 // pred_region
      _
    $region45: #{tpu_custom_call.1} parent=1 // pred_fallthru
      _
    // Predicated region
    $region46: #{tpu_custom_call.1} parent=1 // pred_check
      _
    $region47: #{tpu_custom_call.1} parent=1 // pred_check_branch
      %124 = sbr.rel (0) target = $region49
    $region48: #{tpu_custom_call.1} parent=1 // pred_region
      %s126 = ssub.s32 1280, 1280
      %127 = vsyncadd [#allocation15], %s126
      %s128 = sshll.u32 [#allocation16], 4
      %s129 = int_to_ptr.vmem [resolvable:$true] %s128
      %134 = dma.hbm_to_vmem [thread:$0]  %s11, 1280, %s129, [#allocation15], 128, 128, 8
    $region49: #{tpu_custom_call.1} parent=1 // pred_fallthru
      _
    // Predicated region
    $region50: #{tpu_custom_call.1} parent=1 // pred_check
      _
    $region51: #{tpu_custom_call.1} parent=1 // pred_check_branch
      %136 = sbr.rel (0) target = $region53
    $region52: #{tpu_custom_call.1} parent=1 // pred_region
      _
    $region53: #{tpu_custom_call.1} parent=1 // pred_fallthru
      _
    // Predicated region
    $region54: #{tpu_custom_call.1} parent=1 // pred_check
      _
    $region55: #{tpu_custom_call.1} parent=1 // pred_check_branch
      %138 = sbr.rel (0) target = $region57
    $region56: #{tpu_custom_call.1} parent=1 // pred_region
      %139 = dma.done [#allocation3], 128
    $region57: #{tpu_custom_call.1} parent=1 // pred_fallthru
      _
    // Predicated region
    $region58: #{tpu_custom_call.1} parent=1 // pred_check
      _
    $region59: #{tpu_custom_call.1} parent=1 // pred_check_branch
      %141 = sbr.rel (0) target = $region61
    $region60: #{tpu_custom_call.1} parent=1 // pred_region
      %142 = dma.done [#allocation6], 128
    $region61: #{tpu_custom_call.1} parent=1 // pred_fallthru
      _
    // Predicated region
    $region62: #{tpu_custom_call.1} parent=1 // pred_check
      _
    $region63: #{tpu_custom_call.1} parent=1 // pred_check_branch
      %144 = sbr.rel (0) target = $region65
    $region64: #{tpu_custom_call.1} parent=1 // pred_region
      %145 = dma.done [#allocation6], 1024
    $region65: #{tpu_custom_call.1} parent=1 // pred_fallthru
      _
    // Predicated region
    $region66: #{tpu_custom_call.1} parent=1 // pred_check
      _
    $region67: #{tpu_custom_call.1} parent=1 // pred_check_branch
      %147 = sbr.rel (0) target = $region69
    $region68: #{tpu_custom_call.1} parent=1 // pred_region
      %148 = dma.done [#allocation9], 1024
    $region69: #{tpu_custom_call.1} parent=1 // pred_fallthru
      _
    // Predicated region
    $region70: #{tpu_custom_call.1} parent=1 // pred_check
      _
    $region71: #{tpu_custom_call.1} parent=1 // pred_check_branch
      %150 = sbr.rel (0) target = $region73
    $region72: #{tpu_custom_call.1} parent=1 // pred_region
      %151 = dma.done [#allocation9], 128
    $region73: #{tpu_custom_call.1} parent=1 // pred_fallthru
      _
    // Predicated region
    $region74: #{tpu_custom_call.1} parent=1 // pred_check
      _
    $region75: #{tpu_custom_call.1} parent=1 // pred_check_branch
      %153 = sbr.rel (0) target = $region77
    $region76: #{tpu_custom_call.1} parent=1 // pred_region
      %154 = dma.done [#allocation12], 512
    $region77: #{tpu_custom_call.1} parent=1 // pred_fallthru
      _
    // Predicated region
    $region78: #{tpu_custom_call.1} parent=1 // pred_check
      _
    $region79: #{tpu_custom_call.1} parent=1 // pred_check_branch
      %156 = sbr.rel (0) target = $region81
    $region80: #{tpu_custom_call.1} parent=1 // pred_region
      %157 = dma.done [#allocation12], 768
    $region81: #{tpu_custom_call.1} parent=1 // pred_fallthru
      _
    // Predicated region
    $region82: #{tpu_custom_call.1} parent=1 // pred_check
      _
    $region83: #{tpu_custom_call.1} parent=1 // pred_check_branch
      %159 = sbr.rel (0) target = $region85
    $region84: #{tpu_custom_call.1} parent=1 // pred_region
      %160 = dma.done [#allocation15], 512
    $region85: #{tpu_custom_call.1} parent=1 // pred_fallthru
      _
    // Predicated region
    $region86: #{tpu_custom_call.1} parent=1 // pred_check
      _
    $region87: #{tpu_custom_call.1} parent=1 // pred_check_branch
      %162 = sbr.rel (0) target = $region89
    $region88: #{tpu_custom_call.1} parent=1 // pred_region
      %163 = dma.done [#allocation15], 1280
    $region89: #{tpu_custom_call.1} parent=1 // pred_fallthru
      _
    %v164 = vld [vmem:[#allocation2] sm:$0xff]
    %v165 = vld [vmem:[#allocation5] sm:$0xff]
    %v166 = vld [vmem:[#allocation7] sm:$0xff]
    %v167 = vld [vmem:[#allocation7 + $0x8] sm:$0xff]
    %v168 = vld [vmem:[#allocation7 + $0x10] sm:$0xff]
    %v169 = vld [vmem:[#allocation7 + $0x18] sm:$0xff]
    %v170 = vld [vmem:[#allocation7 + $0x20] sm:$0xff]
    %v171 = vld [vmem:[#allocation7 + $0x28] sm:$0xff]
    %v172 = vld [vmem:[#allocation7 + $0x30] sm:$0xff]
    %v173 = vld [vmem:[#allocation7 + $0x38] sm:$0xff]
    %v174 = vld [vmem:[#allocation8] sm:$0xff]
    %v175 = vld [vmem:[#allocation8 + $0x8] sm:$0xff]
    %v176 = vld [vmem:[#allocation8 + $0x10] sm:$0xff]
    %v177 = vld [vmem:[#allocation8 + $0x18] sm:$0xff]
    %v178 = vld [vmem:[#allocation8 + $0x20] sm:$0xff]
    %v179 = vld [vmem:[#allocation8 + $0x28] sm:$0xff]
    %v180 = vld [vmem:[#allocation8 + $0x30] sm:$0xff]
    %v181 = vld [vmem:[#allocation8 + $0x38] sm:$0xff]
    %v182 = vld [vmem:[#allocation10] sm:$0xff]
    %v183 = vld [vmem:[#allocation11] sm:$0xff]
    %v184 = vld [vmem:[#allocation11 + $0x8] sm:$0xff]
    %v185 = vld [vmem:[#allocation11 + $0x10] sm:$0xff]
    %v186 = vld [vmem:[#allocation11 + $0x18] sm:$0xff]
    %vm187 = vcmask 261120
    %v189 = vsel %vm187, %v165, 0
    %191 = vmatprep.subr.mxu0 0.0
    %192 = vmatpush1.msra.mxu0 0.0
    %193 = vmatprep.subr.mxu0 0.0
    %194 = vmatpush1.msra.mxu0 0.0
    %195 = vmatprep.subr.mxu0 0.0
    %196 = vmatpush1.msra.mxu0 0.0
    %197 = vmatprep.subr.mxu0 0.0
    %198 = vmatpush1.msra.mxu0 0.0
    %199 = vmatprep.subr.mxu0 0.0
    %200 = vmatpush1.msra.mxu0 0.0
    %201 = vmatprep.subr.mxu0 0.0
    %202 = vmatpush1.msra.mxu0 0.0
    %203 = vmatprep.subr.mxu0 0.0
    %204 = vmatpush1.msra.mxu0 0.0
    %205 = vmatprep.subr.mxu0 0.0
    %206 = vmatpush1.msra.mxu0 0.0
    %207 = vmatprep.subr.mxu0 0.0
    %208 = vmatpush1.msra.mxu0 0.0
    %209 = vmatprep.subr.mxu0 0.0
    %210 = vmatpush1.msra.mxu0 0.0
    %211 = vmatprep.subr.mxu0 0.0
    %212 = vmatpush1.msra.mxu0 0.0
    %213 = vmatprep.subr.mxu0 0.0
    %214 = vmatpush1.msra.mxu0 0.0
    %215 = vmatprep.subr.mxu0 0.0
    %216 = vmatpush1.msra.mxu0 %v186
    %217 = vmatprep.subr.mxu0 0.0
    %218 = vmatpush1.msra.mxu0 %v185
    %219 = vmatprep.subr.mxu0 0.0
    %220 = vmatpush1.msra.mxu0 %v184
    %221 = vmatprep.subr.mxu0 0.0
    %222 = vmatpush1.msra.mxu0 %v183
    %223 = vmatprep.subr.mxu0 0.0
    %224 = vmatpush2.msra.mxu0 0.0
    %225 = vmatprep.subr.mxu0 0.0
    %226 = vmatpush2.msra.mxu0 0.0
    %227 = vmatprep.subr.mxu0 0.0
    %228 = vmatpush2.msra.mxu0 0.0
    %229 = vmatprep.subr.mxu0 0.0
    %230 = vmatpush2.msra.mxu0 0.0
    %231 = vmatprep.subr.mxu0 0.0
    %232 = vmatpush2.msra.mxu0 0.0
    %233 = vmatprep.subr.mxu0 0.0
    %234 = vmatpush2.msra.mxu0 0.0
    %235 = vmatprep.subr.mxu0 0.0
    %236 = vmatpush2.msra.mxu0 0.0
    %237 = vmatprep.subr.mxu0 0.0
    %238 = vmatpush2.msra.mxu0 0.0
    %239 = vmatprep.subr.mxu0 0.0
    %240 = vmatpush2.msra.mxu0 0.0
    %241 = vmatprep.subr.mxu0 0.0
    %242 = vmatpush2.msra.mxu0 0.0
    %243 = vmatprep.subr.mxu0 0.0
    %244 = vmatpush2.msra.mxu0 0.0
    %245 = vmatprep.subr.mxu0 0.0
    %246 = vmatpush2.msra.mxu0 0.0
    %247 = vmatprep.subr.mxu0 0.0
    %248 = vmatpush2.msra.mxu0 0.0
    %249 = vmatprep.subr.mxu0 0.0
    %250 = vmatpush2.msra.mxu0 0.0
    %251 = vmatprep.subr.mxu0 0.0
    %252 = vmatpush2.msra.mxu0 0.0
    %253 = vmatprep.subr.mxu0 0.0
    %254 = vmatpush2.msra.mxu0 0.0
    %255 = vmatprep.mubr.f32.mxu0 0.0
    %256 = vmatmul.mubr.f32.gmra.mxu0 %v189
    %v257 = vpop.f32.mrf.mxu0
    %v258 = vadd.f32 0.0, %v257
    %v259 = vpop.f32.mrf.mxu0
    %260 = vdwg.mxu0
    %v262 = vcombine.high %v258, %v258
    %v264 = vunpack.c.l.s4 1966171168
    %v265 = vunpack.c.0.s8 %v264
    %v266 = vlaneseq
    %v267 = vshrl.u32 %v266, 7
    %v268 = vsub.s32 %v265, %v267
    %v269 = vrot.slane %v258, %v268
    %v271 = vunpack.c.l.s4 1966171168
    %v272 = vunpack.c.0.s8 %v271
    %v273 = vlaneseq
    %v274 = vshrl.u32 %v273, 7
    %v275 = vsub.s32 %v272, %v274
    %v276 = vrot.slane %v262, %v275
    %v277 = vcombine.high %v269, %v269
    %v278 = vcombine.high %v276, %v276
    %v280 = vunpack.c.l.s4 1966171168
    %v281 = vunpack.c.0.s8 %v280
    %v282 = vlaneseq
    %v283 = vshrl.u32 %v282, 7
    %v284 = vsub.s32 %v281, %v283
    %v285 = vrot.slane %v269, %v284
    %v287 = vunpack.c.l.s4 1966171168
    %v288 = vunpack.c.0.s8 %v287
    %v289 = vlaneseq
    %v290 = vshrl.u32 %v289, 7
    %v291 = vsub.s32 %v288, %v290
    %v292 = vrot.slane %v276, %v291
    %v294 = vunpack.c.l.s4 1966171168
    %v295 = vunpack.c.0.s8 %v294
    %v296 = vlaneseq
    %v297 = vshrl.u32 %v296, 7
    %v298 = vsub.s32 %v295, %v297
    %v299 = vrot.slane %v277, %v298
    %v301 = vunpack.c.l.s4 1966171168
    %v302 = vunpack.c.0.s8 %v301
    %v303 = vlaneseq
    %v304 = vshrl.u32 %v303, 7
    %v305 = vsub.s32 %v302, %v304
    %v306 = vrot.slane %v278, %v305
    %v307 = vcombine.high %v285, %v285
    %v308 = vcombine.high %v292, %v292
    %v309 = vcombine.high %v299, %v299
    %v310 = vcombine.high %v306, %v306
    %v311 = vlaneseq
    %v312 = vshrl.u32 %v311, 7
    %v313 = vsub.s32 0, %v312
    %v314 = vrot.slane %v285, %v313
    %v315 = vlaneseq
    %v316 = vshrl.u32 %v315, 7
    %v317 = vsub.s32 0, %v316
    %v318 = vrot.slane %v299, %v317
    %v319 = vlaneseq
    %v320 = vshrl.u32 %v319, 7
    %v321 = vsub.s32 0, %v320
    %v322 = vrot.slane %v307, %v321
    %v323 = vlaneseq
    %v324 = vshrl.u32 %v323, 7
    %v325 = vsub.s32 0, %v324
    %v326 = vrot.slane %v309, %v325
    %v327 = vlaneseq
    %v328 = vshrl.u32 %v327, 7
    %v329 = vsub.s32 0, %v328
    %v330 = vrot.slane %v292, %v329
    %v331 = vlaneseq
    %v332 = vshrl.u32 %v331, 7
    %v333 = vsub.s32 0, %v332
    %v334 = vrot.slane %v306, %v333
    %v335 = vlaneseq
    %v336 = vshrl.u32 %v335, 7
    %v337 = vsub.s32 0, %v336
    %v338 = vrot.slane %v308, %v337
    %v339 = vlaneseq
    %v340 = vshrl.u32 %v339, 7
    %v341 = vsub.s32 0, %v340
    %v342 = vrot.slane %v310, %v341
    %v351 = vadd.f32 %v314, %v174
    %v352 = vadd.f32 %v318, %v175
    %v353 = vadd.f32 %v322, %v176
    %v354 = vadd.f32 %v326, %v177
    %v355 = vadd.f32 %v330, %v178
    %v356 = vadd.f32 %v334, %v179
    %v357 = vadd.f32 %v338, %v180
    %v358 = vadd.f32 %v342, %v181
    %v359 = vtanh.pop %v351
    %v360 = vtanh.pop %v352
    %v361 = vtanh.pop %v353
    %v362 = vtanh.pop %v354
    %v363 = vtanh.pop %v355
    %v364 = vtanh.pop %v356
    %v365 = vtanh.pop %v357
    %v366 = vtanh.pop %v358
    %v367 = vld [vmem:[%s6] sm:$0x1]
    %v369 = vlaneseq
    %v370 = vshrl.u32 %v369, 7
    %v371 = vsub.s32 0, %v370
    %v372 = vrot.slane %v367, %v371
    %v374 = vmul.f32 %v359, %v372
    %v375 = vmul.f32 %v360, %v372
    %v376 = vmul.f32 %v361, %v372
    %v377 = vmul.f32 %v362, %v372
    %v378 = vmul.f32 %v363, %v372
    %v379 = vmul.f32 %v364, %v372
    %v380 = vmul.f32 %v365, %v372
    %v381 = vmul.f32 %v366, %v372
    %v382 = vsel %vm187, %v374, 0.0
    %383 = vadd.xlane.f32.xlu0 %v382
    %v384 = vpop.xlane.xlu0 %383
    %v385 = vsel %vm187, %v375, 0.0
    %386 = vadd.xlane.f32.xlu0 %v385
    %v387 = vpop.xlane.xlu0 %386
    %v388 = vsel %vm187, %v376, 0.0
    %389 = vadd.xlane.f32.xlu0 %v388
    %v390 = vpop.xlane.xlu0 %389
    %v391 = vsel %vm187, %v377, 0.0
    %392 = vadd.xlane.f32.xlu0 %v391
    %v393 = vpop.xlane.xlu0 %392
    %v394 = vsel %vm187, %v378, 0.0
    %395 = vadd.xlane.f32.xlu0 %v394
    %v396 = vpop.xlane.xlu0 %395
    %v397 = vsel %vm187, %v379, 0.0
    %398 = vadd.xlane.f32.xlu0 %v397
    %v399 = vpop.xlane.xlu0 %398
    %v400 = vsel %vm187, %v380, 0.0
    %401 = vadd.xlane.f32.xlu0 %v400
    %v402 = vpop.xlane.xlu0 %401
    %v403 = vsel %vm187, %v381, 0.0
    %404 = vadd.xlane.f32.xlu0 %v403
    %v405 = vpop.xlane.xlu0 %404
    %vm406 = vcmp.ne.s32.totalorder %v182, 0
    %v415 = vlaneseq
    %v416 = vand.u32 %v415, 127
    %v417 = vlaneseq
    %v418 = vshrl.u32 %v417, 7
    %v419 = vsub.s32 %v416, %v418
    %v420 = vrot.slane %v384, %v419
    %v421 = vlaneseq
    %v422 = vshrl.u32 %v421, 7
    %v423 = vsub.s32 %v416, %v422
    %v424 = vrot.slane %v387, %v423
    %v425 = vlaneseq
    %v426 = vshrl.u32 %v425, 7
    %v427 = vsub.s32 %v416, %v426
    %v428 = vrot.slane %v390, %v427
    %v429 = vlaneseq
    %v430 = vshrl.u32 %v429, 7
    %v431 = vsub.s32 %v416, %v430
    %v432 = vrot.slane %v393, %v431
    %v433 = vlaneseq
    %v434 = vshrl.u32 %v433, 7
    %v435 = vsub.s32 %v416, %v434
    %v436 = vrot.slane %v396, %v435
    %v437 = vlaneseq
    %v438 = vshrl.u32 %v437, 7
    %v439 = vsub.s32 %v416, %v438
    %v440 = vrot.slane %v399, %v439
    %v441 = vlaneseq
    %v442 = vshrl.u32 %v441, 7
    %v443 = vsub.s32 %v416, %v442
    %v444 = vrot.slane %v402, %v443
    %v445 = vlaneseq
    %v446 = vshrl.u32 %v445, 7
    %v447 = vsub.s32 %v416, %v446
    %v448 = vrot.slane %v405, %v447
    %vm449 = vcmask 1041409
    %v450 = vsel %vm449, %v424, %v420
    %vm451 = vcmask 1042434
    %v452 = vsel %vm451, %v428, %v450
    %vm453 = vcmask 1043459
    %v454 = vsel %vm453, %v432, %v452
    %vm455 = vcmask 1044484
    %v456 = vsel %vm455, %v436, %v454
    %vm457 = vcmask 1045509
    %v458 = vsel %vm457, %v440, %v456
    %vm459 = vcmask 1046534
    %v460 = vsel %vm459, %v444, %v458
    %vm461 = vcmask 1047559
    %v462 = vsel %vm461, %v448, %v460
    %v464 = vsel %vm406, %v462, -1e+10
    %vm465 = vcmask 64512
    %v466 = vsel %vm465, %v464, -inf
    %467 = vmax.xlane.f32.xlu0 %v466
    %v468 = vpop.xlane.xlu0 %467
    %v469 = vsub.f32 %v464, %v468
    %v470 = vmul.f32 %v469, 1.442695
    %v471 = vpow.pop %v470
    %v472 = vsel %vm465, %v471, 0.0
    %473 = vadd.xlane.f32.xlu0 %v472
    %v474 = vpop.xlane.xlu0 %473
    %v475 = vrcp.pop %v474
    %v476 = vmul.f32 %v471, %v475
    %v477 = vlaneseq
    %v478 = vshrl.u32 %v477, 7
    %v479 = vsub.s32 0, %v478
    %v480 = vrot.slane %v476, %v479
    %482 = vbcast.lane.b32.xlu0 %v480, 256
    %v483 = vpop.permute.xlu0 %482
    %v484 = vlaneseq
    %v485 = vshrl.u32 %v484, 7
    %v486 = vsub.s32 1, %v485
    %v487 = vrot.slane %v476, %v486
    %489 = vbcast.lane.b32.xlu0 %v487, 256
    %v490 = vpop.permute.xlu0 %489
    %v491 = vlaneseq
    %v492 = vshrl.u32 %v491, 7
    %v493 = vsub.s32 2, %v492
    %v494 = vrot.slane %v476, %v493
    %496 = vbcast.lane.b32.xlu0 %v494, 256
    %v497 = vpop.permute.xlu0 %496
    %v498 = vlaneseq
    %v499 = vshrl.u32 %v498, 7
    %v500 = vsub.s32 3, %v499
    %v501 = vrot.slane %v476, %v500
    %503 = vbcast.lane.b32.xlu0 %v501, 256
    %v504 = vpop.permute.xlu0 %503
    %v505 = vlaneseq
    %v506 = vshrl.u32 %v505, 7
    %v507 = vsub.s32 4, %v506
    %v508 = vrot.slane %v476, %v507
    %510 = vbcast.lane.b32.xlu0 %v508, 256
    %v511 = vpop.permute.xlu0 %510
    %v512 = vlaneseq
    %v513 = vshrl.u32 %v512, 7
    %v514 = vsub.s32 5, %v513
    %v515 = vrot.slane %v476, %v514
    %517 = vbcast.lane.b32.xlu0 %v515, 256
    %v518 = vpop.permute.xlu0 %517
    %v519 = vlaneseq
    %v520 = vshrl.u32 %v519, 7
    %v521 = vsub.s32 6, %v520
    %v522 = vrot.slane %v476, %v521
    %524 = vbcast.lane.b32.xlu0 %v522, 256
    %v525 = vpop.permute.xlu0 %524
    %v526 = vlaneseq
    %v527 = vshrl.u32 %v526, 7
    %v528 = vsub.s32 7, %v527
    %v529 = vrot.slane %v476, %v528
    %531 = vbcast.lane.b32.xlu0 %v529, 256
    %v532 = vpop.permute.xlu0 %531
    %v533 = vmul.f32 %v483, %v166
    %v534 = vmul.f32 %v490, %v167
    %v535 = vmul.f32 %v497, %v168
    %v536 = vmul.f32 %v504, %v169
    %v537 = vmul.f32 %v511, %v170
    %v538 = vmul.f32 %v518, %v171
    %v539 = vmul.f32 %v525, %v172
    %v540 = vmul.f32 %v532, %v173
    %v541 = vsel %vm187, %v533, 0.0
    %v542 = vrot.slane %v541, 4
    %v543 = vadd.f32 %v541, %v542
    %v544 = vrot.slane %v543, 2
    %v545 = vadd.f32 %v543, %v544
    %v546 = vrot.slane %v545, 1
    %v547 = vadd.f32 %v545, %v546
    %v548 = vsel %vm187, %v534, 0.0
    %v549 = vrot.slane %v548, 4
    %v550 = vadd.f32 %v548, %v549
    %v551 = vrot.slane %v550, 2
    %v552 = vadd.f32 %v550, %v551
    %v553 = vrot.slane %v552, 1
    %v554 = vadd.f32 %v552, %v553
    %v555 = vsel %vm187, %v535, 0.0
    %v556 = vrot.slane %v555, 4
    %v557 = vadd.f32 %v555, %v556
    %v558 = vrot.slane %v557, 2
    %v559 = vadd.f32 %v557, %v558
    %v560 = vrot.slane %v559, 1
    %v561 = vadd.f32 %v559, %v560
    %v562 = vsel %vm187, %v536, 0.0
    %v563 = vrot.slane %v562, 4
    %v564 = vadd.f32 %v562, %v563
    %v565 = vrot.slane %v564, 2
    %v566 = vadd.f32 %v564, %v565
    %v567 = vrot.slane %v566, 1
    %v568 = vadd.f32 %v566, %v567
    %v569 = vsel %vm187, %v537, 0.0
    %v570 = vrot.slane %v569, 4
    %v571 = vadd.f32 %v569, %v570
    %v572 = vrot.slane %v571, 2
    %v573 = vadd.f32 %v571, %v572
    %v574 = vrot.slane %v573, 1
    %v575 = vadd.f32 %v573, %v574
    %v576 = vsel %vm187, %v538, 0.0
    %v577 = vrot.slane %v576, 4
    %v578 = vadd.f32 %v576, %v577
    %v579 = vrot.slane %v578, 2
    %v580 = vadd.f32 %v578, %v579
    %v581 = vrot.slane %v580, 1
    %v582 = vadd.f32 %v580, %v581
    %v583 = vsel %vm187, %v539, 0.0
    %v584 = vrot.slane %v583, 4
    %v585 = vadd.f32 %v583, %v584
    %v586 = vrot.slane %v585, 2
    %v587 = vadd.f32 %v585, %v586
    %v588 = vrot.slane %v587, 1
    %v589 = vadd.f32 %v587, %v588
    %v590 = vsel %vm187, %v540, 0.0
    %v591 = vrot.slane %v590, 4
    %v592 = vadd.f32 %v590, %v591
    %v593 = vrot.slane %v592, 2
    %v594 = vadd.f32 %v592, %v593
    %v595 = vrot.slane %v594, 1
    %v596 = vadd.f32 %v594, %v595
    %v597 = vld [vmem:[#allocation13] sm:$0xff]
    %v598 = vld [vmem:[#allocation13 + $0x8] sm:$0xff]
    %v599 = vld [vmem:[#allocation13 + $0x10] sm:$0xff]
    %v600 = vld [vmem:[#allocation13 + $0x18] sm:$0xff]
    %v601 = vld [vmem:[#allocation13 + $0x20] sm:$0xff]
    %v602 = vld [vmem:[#allocation13 + $0x28] sm:$0xff]
    %v611 = vsel %vm449, %v554, %v547
    %v612 = vsel %vm451, %v561, %v611
    %v613 = vsel %vm453, %v568, %v612
    %v614 = vsel %vm455, %v575, %v613
    %v615 = vsel %vm457, %v582, %v614
    %v616 = vsel %vm459, %v589, %v615
    %v617 = vsel %vm461, %v596, %v616
    %v618 = vsel %vm187, %v617, 0
    %620 = vmatprep.subr.mxu0 0.0
    %621 = vmatpush1.msra.mxu0 0.0
    %622 = vmatprep.subr.mxu0 0.0
    %623 = vmatpush1.msra.mxu0 0.0
    %624 = vmatprep.subr.mxu0 0.0
    %625 = vmatpush1.msra.mxu0 0.0
    %626 = vmatprep.subr.mxu0 0.0
    %627 = vmatpush1.msra.mxu0 0.0
    %628 = vmatprep.subr.mxu0 0.0
    %629 = vmatpush1.msra.mxu0 0.0
    %630 = vmatprep.subr.mxu0 0.0
    %631 = vmatpush1.msra.mxu0 0.0
    %632 = vmatprep.subr.mxu0 0.0
    %633 = vmatpush1.msra.mxu0 0.0
    %634 = vmatprep.subr.mxu0 0.0
    %635 = vmatpush1.msra.mxu0 0.0
    %636 = vmatprep.subr.mxu0 0.0
    %637 = vmatpush1.msra.mxu0 0.0
    %638 = vmatprep.subr.mxu0 0.0
    %639 = vmatpush1.msra.mxu0 0.0
    %640 = vmatprep.subr.mxu0 0.0
    %641 = vmatpush1.msra.mxu0 0.0
    %642 = vmatprep.subr.mxu0 0.0
    %643 = vmatpush1.msra.mxu0 0.0
    %644 = vmatprep.subr.mxu0 0.0
    %645 = vmatpush1.msra.mxu0 %v602
    %646 = vmatprep.subr.mxu0 0.0
    %647 = vmatpush1.msra.mxu0 %v601
    %648 = vmatprep.subr.mxu0 0.0
    %649 = vmatpush1.msra.mxu0 %v600
    %650 = vmatprep.subr.mxu0 0.0
    %651 = vmatpush1.msra.mxu0 %v599
    %652 = vmatprep.subr.mxu0 0.0
    %653 = vmatpush2.msra.mxu0 0.0
    %654 = vmatprep.subr.mxu0 0.0
    %655 = vmatpush2.msra.mxu0 0.0
    %656 = vmatprep.subr.mxu0 0.0
    %657 = vmatpush2.msra.mxu0 0.0
    %658 = vmatprep.subr.mxu0 0.0
    %659 = vmatpush2.msra.mxu0 0.0
    %660 = vmatprep.subr.mxu0 0.0
    %661 = vmatpush2.msra.mxu0 0.0
    %662 = vmatprep.subr.mxu0 0.0
    %663 = vmatpush2.msra.mxu0 0.0
    %664 = vmatprep.subr.mxu0 0.0
    %665 = vmatpush2.msra.mxu0 0.0
    %666 = vmatprep.subr.mxu0 0.0
    %667 = vmatpush2.msra.mxu0 0.0
    %668 = vmatprep.subr.mxu0 0.0
    %669 = vmatpush2.msra.mxu0 0.0
    %670 = vmatprep.subr.mxu0 0.0
    %671 = vmatpush2.msra.mxu0 0.0
    %672 = vmatprep.subr.mxu0 0.0
    %673 = vmatpush2.msra.mxu0 0.0
    %674 = vmatprep.subr.mxu0 0.0
    %675 = vmatpush2.msra.mxu0 0.0
    %676 = vmatprep.subr.mxu0 0.0
    %677 = vmatpush2.msra.mxu0 0.0
    %678 = vmatprep.subr.mxu0 0.0
    %679 = vmatpush2.msra.mxu0 0.0
    %680 = vmatprep.subr.mxu0 0.0
    %681 = vmatpush2.msra.mxu0 0.0
    %682 = vmatprep.subr.mxu0 0.0
    %683 = vmatpush2.msra.mxu0 0.0
    %684 = vmatprep.mubr.f32.mxu0 0.0
    %685 = vmatmul.mubr.f32.gmra.mxu0 %v618
    %v686 = vpop.f32.mrf.mxu0
    %v687 = vadd.f32 0.0, %v686
    %v688 = vpop.f32.mrf.mxu0
    %689 = vdwg.mxu0
    %vm690 = vcmask 130048
    %v692 = vsel %vm690, %v164, 0
    %694 = vmatprep.subr.mxu0 0.0
    %695 = vmatpush1.msra.mxu0 0.0
    %696 = vmatprep.subr.mxu0 0.0
    %697 = vmatpush1.msra.mxu0 0.0
    %698 = vmatprep.subr.mxu0 0.0
    %699 = vmatpush1.msra.mxu0 0.0
    %700 = vmatprep.subr.mxu0 0.0
    %701 = vmatpush1.msra.mxu0 0.0
    %702 = vmatprep.subr.mxu0 0.0
    %703 = vmatpush1.msra.mxu0 0.0
    %704 = vmatprep.subr.mxu0 0.0
    %705 = vmatpush1.msra.mxu0 0.0
    %706 = vmatprep.subr.mxu0 0.0
    %707 = vmatpush1.msra.mxu0 0.0
    %708 = vmatprep.subr.mxu0 0.0
    %709 = vmatpush1.msra.mxu0 0.0
    %710 = vmatprep.subr.mxu0 0.0
    %711 = vmatpush1.msra.mxu0 0.0
    %712 = vmatprep.subr.mxu0 0.0
    %713 = vmatpush1.msra.mxu0 0.0
    %714 = vmatprep.subr.mxu0 0.0
    %715 = vmatpush1.msra.mxu0 0.0
    %716 = vmatprep.subr.mxu0 0.0
    %717 = vmatpush1.msra.mxu0 0.0
    %718 = vmatprep.subr.mxu0 0.0
    %719 = vmatpush1.msra.mxu0 0.0
    %720 = vmatprep.subr.mxu0 0.0
    %721 = vmatpush1.msra.mxu0 0.0
    %722 = vmatprep.subr.mxu0 0.0
    %723 = vmatpush1.msra.mxu0 %v598
    %724 = vmatprep.subr.mxu0 0.0
    %725 = vmatpush1.msra.mxu0 %v597
    %726 = vmatprep.subr.mxu0 0.0
    %727 = vmatpush2.msra.mxu0 0.0
    %728 = vmatprep.subr.mxu0 0.0
    %729 = vmatpush2.msra.mxu0 0.0
    %730 = vmatprep.subr.mxu0 0.0
    %731 = vmatpush2.msra.mxu0 0.0
    %732 = vmatprep.subr.mxu0 0.0
    %733 = vmatpush2.msra.mxu0 0.0
    %734 = vmatprep.subr.mxu0 0.0
    %735 = vmatpush2.msra.mxu0 0.0
    %736 = vmatprep.subr.mxu0 0.0
    %737 = vmatpush2.msra.mxu0 0.0
    %738 = vmatprep.subr.mxu0 0.0
    %739 = vmatpush2.msra.mxu0 0.0
    %740 = vmatprep.subr.mxu0 0.0
    %741 = vmatpush2.msra.mxu0 0.0
    %742 = vmatprep.subr.mxu0 0.0
    %743 = vmatpush2.msra.mxu0 0.0
    %744 = vmatprep.subr.mxu0 0.0
    %745 = vmatpush2.msra.mxu0 0.0
    %746 = vmatprep.subr.mxu0 0.0
    %747 = vmatpush2.msra.mxu0 0.0
    %748 = vmatprep.subr.mxu0 0.0
    %749 = vmatpush2.msra.mxu0 0.0
    %750 = vmatprep.subr.mxu0 0.0
    %751 = vmatpush2.msra.mxu0 0.0
    %752 = vmatprep.subr.mxu0 0.0
    %753 = vmatpush2.msra.mxu0 0.0
    %754 = vmatprep.subr.mxu0 0.0
    %755 = vmatpush2.msra.mxu0 0.0
    %756 = vmatprep.subr.mxu0 0.0
    %757 = vmatpush2.msra.mxu0 0.0
    %758 = vmatprep.mubr.f32.mxu0 0.0
    %759 = vmatmul.mubr.f32.gmra.mxu0 %v692
    %v760 = vpop.f32.mrf.mxu0
    %v761 = vadd.f32 %v687, %v760
    %v762 = vpop.f32.mrf.mxu0
    %763 = vdwg.mxu0
    %v764 = vld [vmem:[%s9] sm:$0x1]
    %v766 = vlaneseq
    %v767 = vshrl.u32 %v766, 7
    %v768 = vsub.s32 0, %v767
    %v769 = vrot.slane %v764, %v768
    %v771 = vadd.f32 %v761, %v769
    %v772 = vld [vmem:[#allocation14] sm:$0xff]
    %v773 = vld [vmem:[#allocation14 + $0x8] sm:$0xff]
    %v774 = vld [vmem:[#allocation14 + $0x10] sm:$0xff]
    %v775 = vld [vmem:[#allocation14 + $0x18] sm:$0xff]
    %v776 = vld [vmem:[%s10] sm:$0x1]
    %v778 = vlaneseq
    %v779 = vshrl.u32 %v778, 7
    %v780 = vsub.s32 0, %v779
    %v781 = vrot.slane %v776, %v780
    %783 = vmatprep.subr.mxu0 0.0
    %784 = vmatpush1.msra.mxu0 0.0
    %785 = vmatprep.subr.mxu0 0.0
    %786 = vmatpush1.msra.mxu0 0.0
    %787 = vmatprep.subr.mxu0 0.0
    %788 = vmatpush1.msra.mxu0 0.0
    %789 = vmatprep.subr.mxu0 0.0
    %790 = vmatpush1.msra.mxu0 0.0
    %791 = vmatprep.subr.mxu0 0.0
    %792 = vmatpush1.msra.mxu0 0.0
    %793 = vmatprep.subr.mxu0 0.0
    %794 = vmatpush1.msra.mxu0 0.0
    %795 = vmatprep.subr.mxu0 0.0
    %796 = vmatpush1.msra.mxu0 0.0
    %797 = vmatprep.subr.mxu0 0.0
    %798 = vmatpush1.msra.mxu0 0.0
    %799 = vmatprep.subr.mxu0 0.0
    %800 = vmatpush1.msra.mxu0 0.0
    %801 = vmatprep.subr.mxu0 0.0
    %802 = vmatpush1.msra.mxu0 0.0
    %803 = vmatprep.subr.mxu0 0.0
    %804 = vmatpush1.msra.mxu0 0.0
    %805 = vmatprep.subr.mxu0 0.0
    %806 = vmatpush1.msra.mxu0 0.0
    %807 = vmatprep.subr.mxu0 0.0
    %808 = vmatpush1.msra.mxu0 %v775
    %809 = vmatprep.subr.mxu0 0.0
    %810 = vmatpush1.msra.mxu0 %v774
    %811 = vmatprep.subr.mxu0 0.0
    %812 = vmatpush1.msra.mxu0 %v773
    %813 = vmatprep.subr.mxu0 0.0
    %814 = vmatpush1.msra.mxu0 %v772
    %815 = vmatprep.subr.mxu0 0.0
    %816 = vmatpush2.msra.mxu0 0.0
    %817 = vmatprep.subr.mxu0 0.0
    %818 = vmatpush2.msra.mxu0 0.0
    %819 = vmatprep.subr.mxu0 0.0
    %820 = vmatpush2.msra.mxu0 0.0
    %821 = vmatprep.subr.mxu0 0.0
    %822 = vmatpush2.msra.mxu0 0.0
    %823 = vmatprep.subr.mxu0 0.0
    %824 = vmatpush2.msra.mxu0 0.0
    %825 = vmatprep.subr.mxu0 0.0
    %826 = vmatpush2.msra.mxu0 0.0
    %827 = vmatprep.subr.mxu0 0.0
    %828 = vmatpush2.msra.mxu0 0.0
    %829 = vmatprep.subr.mxu0 0.0
    %830 = vmatpush2.msra.mxu0 0.0
    %831 = vmatprep.subr.mxu0 0.0
    %832 = vmatpush2.msra.mxu0 0.0
    %833 = vmatprep.subr.mxu0 0.0
    %834 = vmatpush2.msra.mxu0 0.0
    %835 = vmatprep.subr.mxu0 0.0
    %836 = vmatpush2.msra.mxu0 0.0
    %837 = vmatprep.subr.mxu0 0.0
    %838 = vmatpush2.msra.mxu0 0.0
    %839 = vmatprep.subr.mxu0 0.0
    %840 = vmatpush2.msra.mxu0 0.0
    %841 = vmatprep.subr.mxu0 0.0
    %842 = vmatpush2.msra.mxu0 0.0
    %843 = vmatprep.subr.mxu0 0.0
    %844 = vmatpush2.msra.mxu0 0.0
    %845 = vmatprep.subr.mxu0 0.0
    %846 = vmatpush2.msra.mxu0 0.0
    %847 = vmatprep.mubr.f32.mxu0 0.0
    %848 = vmatmul.mubr.f32.gmra.mxu0 %v189
    %v849 = vpop.f32.mrf.mxu0
    %v850 = vadd.f32 %v781, %v849
    %v851 = vpop.f32.mrf.mxu0
    %852 = vdwg.mxu0
    %v853 = vadd.f32 %v771, %v850
    %v854 = vxor.u32 %v853, 2147483648
    %v855 = vmul.f32 %v854, 1.442695
    %v856 = vpow.pop %v855
    %v857 = vadd.f32 %v856, 1.0
    %v858 = vrcp.pop %v857
    %v859 = vmul.f32 1.0, %v858
    %861 = vrot.lane.b32.xlu0 %v850, 64
    %v862 = vpop.permute.xlu0 %861
    %v864 = vmul.f32 %v859, %v862
    %866 = vrot.lane.b32.xlu0 %v864, 64
    %v867 = vpop.permute.xlu0 %866
    %v869 = vadd.f32 %v771, %v867
    %v870 = vtanh.pop %v869
    %v871 = vsub.f32 1.0, %v859
    %873 = vrot.lane.b32.xlu0 %v870, 96
    %v874 = vpop.permute.xlu0 %873
    %v876 = vmul.f32 %v871, %v874
    %877 = vrot.lane.b32.xlu0 %v165, 32
    %v878 = vpop.permute.xlu0 %877
    %v880 = vmul.f32 %v859, %v878
    %v881 = vadd.f32 %v876, %v880
    %v882 = vld [vmem:[#allocation16] sm:$0xff]
    %v883 = vld [vmem:[#allocation16 + $0x8] sm:$0xff]
    %v884 = vld [vmem:[#allocation16 + $0x10] sm:$0xff]
    %v885 = vld [vmem:[#allocation16 + $0x18] sm:$0xff]
    %v886 = vld [vmem:[#allocation16 + $0x20] sm:$0xff]
    %v887 = vld [vmem:[#allocation16 + $0x28] sm:$0xff]
    %v888 = vld [vmem:[#allocation16 + $0x30] sm:$0xff]
    %v889 = vld [vmem:[#allocation16 + $0x38] sm:$0xff]
    %890 = vmatprep.subr.mxu0 0.0
    %891 = vmatpush1.msra.mxu0 0.0
    %892 = vmatprep.subr.mxu0 0.0
    %893 = vmatpush1.msra.mxu0 0.0
    %894 = vmatprep.subr.mxu0 0.0
    %895 = vmatpush1.msra.mxu0 0.0
    %896 = vmatprep.subr.mxu0 0.0
    %897 = vmatpush1.msra.mxu0 0.0
    %898 = vmatprep.subr.mxu0 0.0
    %899 = vmatpush1.msra.mxu0 0.0
    %900 = vmatprep.subr.mxu0 0.0
    %901 = vmatpush1.msra.mxu0 0.0
    %902 = vmatprep.subr.mxu0 0.0
    %903 = vmatpush1.msra.mxu0 0.0
    %904 = vmatprep.subr.mxu0 0.0
    %905 = vmatpush1.msra.mxu0 0.0
    %906 = vmatprep.subr.mxu0 0.0
    %907 = vmatpush1.msra.mxu0 0.0
    %908 = vmatprep.subr.mxu0 0.0
    %909 = vmatpush1.msra.mxu0 0.0
    %910 = vmatprep.subr.mxu0 0.0
    %911 = vmatpush1.msra.mxu0 0.0
    %912 = vmatprep.subr.mxu0 0.0
    %913 = vmatpush1.msra.mxu0 0.0
    %914 = vmatprep.subr.mxu0 0.0
    %915 = vmatpush1.msra.mxu0 %v889
    %916 = vmatprep.subr.mxu0 0.0
    %917 = vmatpush1.msra.mxu0 %v888
    %918 = vmatprep.subr.mxu0 0.0
    %919 = vmatpush1.msra.mxu0 %v887
    %920 = vmatprep.subr.mxu0 0.0
    %921 = vmatpush1.msra.mxu0 %v886
    %922 = vmatprep.subr.mxu0 0.0
    %923 = vmatpush2.msra.mxu0 0.0
    %924 = vmatprep.subr.mxu0 0.0
    %925 = vmatpush2.msra.mxu0 0.0
    %926 = vmatprep.subr.mxu0 0.0
    %927 = vmatpush2.msra.mxu0 0.0
    %928 = vmatprep.subr.mxu0 0.0
    %929 = vmatpush2.msra.mxu0 0.0
    %930 = vmatprep.subr.mxu0 0.0
    %931 = vmatpush2.msra.mxu0 0.0
    %932 = vmatprep.subr.mxu0 0.0
    %933 = vmatpush2.msra.mxu0 0.0
    %934 = vmatprep.subr.mxu0 0.0
    %935 = vmatpush2.msra.mxu0 0.0
    %936 = vmatprep.subr.mxu0 0.0
    %937 = vmatpush2.msra.mxu0 0.0
    %938 = vmatprep.subr.mxu0 0.0
    %939 = vmatpush2.msra.mxu0 0.0
    %940 = vmatprep.subr.mxu0 0.0
    %941 = vmatpush2.msra.mxu0 0.0
    %942 = vmatprep.subr.mxu0 0.0
    %943 = vmatpush2.msra.mxu0 0.0
    %944 = vmatprep.subr.mxu0 0.0
    %945 = vmatpush2.msra.mxu0 0.0
    %946 = vmatprep.subr.mxu0 0.0
    %947 = vmatpush2.msra.mxu0 0.0
    %948 = vmatprep.subr.mxu0 0.0
    %949 = vmatpush2.msra.mxu0 0.0
    %950 = vmatprep.subr.mxu0 0.0
    %951 = vmatpush2.msra.mxu0 0.0
    %952 = vmatprep.subr.mxu0 0.0
    %953 = vmatpush2.msra.mxu0 0.0
    %954 = vmatprep.mubr.f32.mxu0 0.0
    %955 = vmatmul.mubr.f32.gmra.mxu0 %v618
    %v956 = vpop.f32.mrf.mxu0
    %v957 = vadd.f32 0.0, %v956
    %v958 = vpop.f32.mrf.mxu0
    %959 = vdwg.mxu0
    %961 = vrot.lane.b32.xlu0 %v881, 96
    %v962 = vpop.permute.xlu0 %961
    %v963 = vsel %vm187, %v962, 0
    %965 = vmatprep.subr.mxu0 0.0
    %966 = vmatpush1.msra.mxu0 0.0
    %967 = vmatprep.subr.mxu0 0.0
    %968 = vmatpush1.msra.mxu0 0.0
    %969 = vmatprep.subr.mxu0 0.0
    %970 = vmatpush1.msra.mxu0 0.0
    %971 = vmatprep.subr.mxu0 0.0
    %972 = vmatpush1.msra.mxu0 0.0
    %973 = vmatprep.subr.mxu0 0.0
    %974 = vmatpush1.msra.mxu0 0.0
    %975 = vmatprep.subr.mxu0 0.0
    %976 = vmatpush1.msra.mxu0 0.0
    %977 = vmatprep.subr.mxu0 0.0
    %978 = vmatpush1.msra.mxu0 0.0
    %979 = vmatprep.subr.mxu0 0.0
    %980 = vmatpush1.msra.mxu0 0.0
    %981 = vmatprep.subr.mxu0 0.0
    %982 = vmatpush1.msra.mxu0 0.0
    %983 = vmatprep.subr.mxu0 0.0
    %984 = vmatpush1.msra.mxu0 0.0
    %985 = vmatprep.subr.mxu0 0.0
    %986 = vmatpush1.msra.mxu0 0.0
    %987 = vmatprep.subr.mxu0 0.0
    %988 = vmatpush1.msra.mxu0 0.0
    %989 = vmatprep.subr.mxu0 0.0
    %990 = vmatpush1.msra.mxu0 %v885
    %991 = vmatprep.subr.mxu0 0.0
    %992 = vmatpush1.msra.mxu0 %v884
    %993 = vmatprep.subr.mxu0 0.0
    %994 = vmatpush1.msra.mxu0 %v883
    %995 = vmatprep.subr.mxu0 0.0
    %996 = vmatpush1.msra.mxu0 %v882
    %997 = vmatprep.subr.mxu0 0.0
    %998 = vmatpush2.msra.mxu0 0.0
    %999 = vmatprep.subr.mxu0 0.0
    %1000 = vmatpush2.msra.mxu0 0.0
    %1001 = vmatprep.subr.mxu0 0.0
    %1002 = vmatpush2.msra.mxu0 0.0
    %1003 = vmatprep.subr.mxu0 0.0
    %1004 = vmatpush2.msra.mxu0 0.0
    %1005 = vmatprep.subr.mxu0 0.0
    %1006 = vmatpush2.msra.mxu0 0.0
    %1007 = vmatprep.subr.mxu0 0.0
    %1008 = vmatpush2.msra.mxu0 0.0
    %1009 = vmatprep.subr.mxu0 0.0
    %1010 = vmatpush2.msra.mxu0 0.0
    %1011 = vmatprep.subr.mxu0 0.0
    %1012 = vmatpush2.msra.mxu0 0.0
    %1013 = vmatprep.subr.mxu0 0.0
    %1014 = vmatpush2.msra.mxu0 0.0
    %1015 = vmatprep.subr.mxu0 0.0
    %1016 = vmatpush2.msra.mxu0 0.0
    %1017 = vmatprep.subr.mxu0 0.0
    %1018 = vmatpush2.msra.mxu0 0.0
    %1019 = vmatprep.subr.mxu0 0.0
    %1020 = vmatpush2.msra.mxu0 0.0
    %1021 = vmatprep.subr.mxu0 0.0
    %1022 = vmatpush2.msra.mxu0 0.0
    %1023 = vmatprep.subr.mxu0 0.0
    %1024 = vmatpush2.msra.mxu0 0.0
    %1025 = vmatprep.subr.mxu0 0.0
    %1026 = vmatpush2.msra.mxu0 0.0
    %1027 = vmatprep.subr.mxu0 0.0
    %1028 = vmatpush2.msra.mxu0 0.0
    %1029 = vmatprep.mubr.f32.mxu0 0.0
    %1030 = vmatmul.mubr.f32.gmra.mxu0 %v963
    %v1031 = vpop.f32.mrf.mxu0
    %v1032 = vadd.f32 %v957, %v1031
    %v1033 = vpop.f32.mrf.mxu0
    %1034 = vdwg.mxu0
    %v1035 = vld [vmem:[#allocation16 + $0x40] sm:$0xff]
    %v1036 = vld [vmem:[#allocation16 + $0x48] sm:$0xff]
    %1037 = vmatprep.subr.mxu0 0.0
    %1038 = vmatpush1.msra.mxu0 0.0
    %1039 = vmatprep.subr.mxu0 0.0
    %1040 = vmatpush1.msra.mxu0 0.0
    %1041 = vmatprep.subr.mxu0 0.0
    %1042 = vmatpush1.msra.mxu0 0.0
    %1043 = vmatprep.subr.mxu0 0.0
    %1044 = vmatpush1.msra.mxu0 0.0
    %1045 = vmatprep.subr.mxu0 0.0
    %1046 = vmatpush1.msra.mxu0 0.0
    %1047 = vmatprep.subr.mxu0 0.0
    %1048 = vmatpush1.msra.mxu0 0.0
    %1049 = vmatprep.subr.mxu0 0.0
    %1050 = vmatpush1.msra.mxu0 0.0
    %1051 = vmatprep.subr.mxu0 0.0
    %1052 = vmatpush1.msra.mxu0 0.0
    %1053 = vmatprep.subr.mxu0 0.0
    %1054 = vmatpush1.msra.mxu0 0.0
    %1055 = vmatprep.subr.mxu0 0.0
    %1056 = vmatpush1.msra.mxu0 0.0
    %1057 = vmatprep.subr.mxu0 0.0
    %1058 = vmatpush1.msra.mxu0 0.0
    %1059 = vmatprep.subr.mxu0 0.0
    %1060 = vmatpush1.msra.mxu0 0.0
    %1061 = vmatprep.subr.mxu0 0.0
    %1062 = vmatpush1.msra.mxu0 0.0
    %1063 = vmatprep.subr.mxu0 0.0
    %1064 = vmatpush1.msra.mxu0 0.0
    %1065 = vmatprep.subr.mxu0 0.0
    %1066 = vmatpush1.msra.mxu0 %v1036
    %1067 = vmatprep.subr.mxu0 0.0
    %1068 = vmatpush1.msra.mxu0 %v1035
    %1069 = vmatprep.subr.mxu0 0.0
    %1070 = vmatpush2.msra.mxu0 0.0
    %1071 = vmatprep.subr.mxu0 0.0
    %1072 = vmatpush2.msra.mxu0 0.0
    %1073 = vmatprep.subr.mxu0 0.0
    %1074 = vmatpush2.msra.mxu0 0.0
    %1075 = vmatprep.subr.mxu0 0.0
    %1076 = vmatpush2.msra.mxu0 0.0
    %1077 = vmatprep.subr.mxu0 0.0
    %1078 = vmatpush2.msra.mxu0 0.0
    %1079 = vmatprep.subr.mxu0 0.0
    %1080 = vmatpush2.msra.mxu0 0.0
    %1081 = vmatprep.subr.mxu0 0.0
    %1082 = vmatpush2.msra.mxu0 0.0
    %1083 = vmatprep.subr.mxu0 0.0
    %1084 = vmatpush2.msra.mxu0 0.0
    %1085 = vmatprep.subr.mxu0 0.0
    %1086 = vmatpush2.msra.mxu0 0.0
    %1087 = vmatprep.subr.mxu0 0.0
    %1088 = vmatpush2.msra.mxu0 0.0
    %1089 = vmatprep.subr.mxu0 0.0
    %1090 = vmatpush2.msra.mxu0 0.0
    %1091 = vmatprep.subr.mxu0 0.0
    %1092 = vmatpush2.msra.mxu0 0.0
    %1093 = vmatprep.subr.mxu0 0.0
    %1094 = vmatpush2.msra.mxu0 0.0
    %1095 = vmatprep.subr.mxu0 0.0
    %1096 = vmatpush2.msra.mxu0 0.0
    %1097 = vmatprep.subr.mxu0 0.0
    %1098 = vmatpush2.msra.mxu0 0.0
    %1099 = vmatprep.subr.mxu0 0.0
    %1100 = vmatpush2.msra.mxu0 0.0
    %1101 = vmatprep.mubr.f32.mxu0 0.0
    %1102 = vmatmul.mubr.f32.gmra.mxu0 %v692
    %v1103 = vpop.f32.mrf.mxu0
    %v1104 = vadd.f32 0.0, %v1103
    %v1105 = vpop.f32.mrf.mxu0
    %1106 = vdwg.mxu0
    %v1107 = vadd.f32 %v1032, %v1104
    %v1108 = vld [vmem:[%s12] sm:$0x1]
    %v1110 = vlaneseq
    %v1111 = vshrl.u32 %v1110, 7
    %v1112 = vsub.s32 0, %v1111
    %v1113 = vrot.slane %v1108, %v1112
    %v1115 = vadd.f32 %v1107, %v1113
    %1116 = vst [vmem:[#allocation17] sm:$0xff] %v1115
    %1118 = vst.msk [vmem:[#allocation18] sm:$0xff] %vm187, %v962
    // Predicated region
    $region90: #{tpu_custom_call.1} parent=1 // pred_check
      _
    $region91: #{tpu_custom_call.1} parent=1 // pred_check_branch
      %1120 = sbr.rel (0) target = $region93
    $region92: #{tpu_custom_call.1} parent=1 // pred_region
      %s1122 = ssub.s32 128, 128
      %1123 = vsyncadd [#allocation4], %s1122
      %s1125 = sshll.u32 [#allocation17], 4
      %s1126 = int_to_ptr.vmem [resolvable:$true] %s1125
      %1128 = dma.vmem_to_hbm [thread:$0]  %s1126, 128, %s13, [#allocation4]
    $region93: #{tpu_custom_call.1} parent=1 // pred_fallthru
      _
    // Predicated region
    $region94: #{tpu_custom_call.1} parent=1 // pred_check
      _
    $region95: #{tpu_custom_call.1} parent=1 // pred_check_branch
      %1130 = sbr.rel (0) target = $region97
    $region96: #{tpu_custom_call.1} parent=1 // pred_region
      %s1132 = ssub.s32 128, 128
      %1133 = vsyncadd [#allocation19], %s1132
      %s1135 = sshll.u32 [#allocation18], 4
      %s1136 = int_to_ptr.vmem [resolvable:$true] %s1135
      %1138 = dma.vmem_to_hbm [thread:$0]  %s1136, 128, %s14, [#allocation19]
    $region97: #{tpu_custom_call.1} parent=1 // pred_fallthru
      _
    // Predicated region
    $region98: #{tpu_custom_call.1} parent=1 // pred_check
      _
    $region99: #{tpu_custom_call.1} parent=1 // pred_check_branch
      %1140 = sbr.rel (0) target = $region101
    $region100: #{tpu_custom_call.1} parent=1 // pred_region
      %1141 = dma.done [#allocation4], 128
    $region101: #{tpu_custom_call.1} parent=1 // pred_fallthru
      _
    // Predicated region
    $region102: #{tpu_custom_call.1} parent=1 // pred_check
      _
    $region103: #{tpu_custom_call.1} parent=1 // pred_check_branch
      %1143 = sbr.rel (0) target = $region105
    $region104: #{tpu_custom_call.1} parent=1 // pred_region
      %1144 = dma.done [#allocation19], 128
    $region105: #{tpu_custom_call.1} parent=1 // pred_fallthru
      _
    %1145 = vsyncpa [#allocation3], 1
    %1146 = vsyncpa [#allocation6], 1
    %1147 = vsyncpa [#allocation9], 1
    %1148 = vsyncpa [#allocation12], 1
    %1149 = vsyncpa [#allocation15], 1
    %1150 = vsyncpa [#allocation4], 1
    %1151 = vsyncpa [#allocation19], 1

</llo_original>
